<compile_context>
chip_gen: v5e
topology: v5e:2x2
jax: 0.10.0
libtpu: 0.0.40
codegen_flags: <defaults>
</compile_context>

<pallas_src>
import functools

import numpy as np
import jax
import jax.numpy as jnp
from jax.experimental import pallas as pl
from jax.experimental.pallas import tpu as pltpu


# --------------------------------------------------------------------------
# Fused kernel: edge-block grid axis (reduction / "arbitrary").
#   step 0          : compute Q_h/K_h/V_h, zero the wV / Z accumulators
#   every step      : project edge block, gather K/Q/V rows via in-register
#                     one-hot selectors, score, scatter-add into accumulators
#   last step       : normalize, O_h + residual + BN1 + FFN + residual + BN2
# --------------------------------------------------------------------------
def _san_fused_kernel(src_ref, dst_ref, x_ref, ea_ref,
                      wq_ref, wk_ref, we_ref, wv_ref, hmask_ref,
                      wo_ref, bo_ref, bn1g_ref, bn1b_ref,
                      w1_ref, b1_ref, w2_ref, b2_ref,
                      bn2g_ref, bn2b_ref,
                      o_ref,
                      q_sc, k_sc, v_sc, wv_acc, z_acc,
                      *, num_nodes, approx_recip):
    e_step = pl.program_id(0)
    cd = q_sc.dtype                     # compute dtype for MXU operands

    # ---- step 0: node projections + accumulator init -----------------------
    @pl.when(e_step == 0)
    def _init():
        x_c = x_ref[...].astype(cd)
        q_sc[...] = jnp.dot(x_c, wq_ref[...],
                            preferred_element_type=jnp.float32).astype(cd)
        k_sc[...] = jnp.dot(x_c, wk_ref[...],          # 1/sqrt(d_head) folded in
                            preferred_element_type=jnp.float32).astype(cd)
        v_sc[...] = jnp.dot(x_c, wv_ref[...],
                            preferred_element_type=jnp.float32).astype(cd)
        wv_acc[...] = jnp.zeros_like(wv_acc)
        z_acc[...] = jnp.zeros_like(z_acc)

    # ---- per edge-block attention ------------------------------------------
    te = src_ref.shape[0]
    iota_n = jax.lax.broadcasted_iota(jnp.int32, (te, num_nodes), 1)
    # Padded edges carry index == num_nodes -> all-zero selector row -> no-op.
    oh_src = (src_ref[...] == iota_n).astype(cd)        # (TE, N)
    oh_dst = (dst_ref[...] == iota_n).astype(cd)        # (TE, N)

    k_src = jnp.dot(oh_src, k_sc[...], preferred_element_type=jnp.float32)  # (TE, D)
    q_dst = jnp.dot(oh_dst, q_sc[...], preferred_element_type=jnp.float32)  # (TE, D)
    v_src = jnp.dot(oh_src, v_sc[...], preferred_element_type=jnp.float32)  # (TE, D)
    e_blk = jnp.dot(ea_ref[...], we_ref[...],
                    preferred_element_type=jnp.float32)                      # (TE, D)

    # score = exp(clamp(sum_dh K*Q*E / sqrt(d_head), -5, 5)), broadcast back
    # across each head's lanes via a (D, D) block-diagonal ones mask.
    s_elem = k_src * q_dst * e_blk                                           # (TE, D)
    s_head = jnp.dot(s_elem, hmask_ref[...],
                     preferred_element_type=jnp.float32)                     # (TE, D)
    score = jnp.exp(jnp.clip(s_head, -5.0, 5.0))                             # (TE, D)
    msg = v_src * score                                                      # (TE, D)

    # scatter-add over destination nodes: contract the selector's edge axis
    # (no materialized transpose).
    dn = (((0,), (0,)), ((), ()))
    wv_acc[...] += jax.lax.dot_general(oh_dst, msg.astype(cd), dn,
                                       preferred_element_type=jnp.float32)   # (N, D)
    z_acc[...] += jax.lax.dot_general(oh_dst, score.astype(cd), dn,
                                      preferred_element_type=jnp.float32)    # (N, D)

    # ---- last step: layer tail ---------------------------------------------
    @pl.when(e_step == pl.num_programs(0) - 1)
    def _finalize():
        h_attn = wv_acc[...] * pl.reciprocal(z_acc[...] + 1e-6,
                                             approx=approx_recip)            # (N, D)
        h = jnp.dot(h_attn.astype(cd), wo_ref[...],
                    preferred_element_type=jnp.float32) + bo_ref[...]        # O_h
        h = x_ref[...].astype(jnp.float32) + h                               # residual 1

        n = h.shape[0]
        # BatchNorm1d #1 (training-mode biased batch stats), single pass
        mean1 = jnp.sum(h, axis=0, keepdims=True) / n
        var1 = jnp.maximum(jnp.sum(h * h, axis=0, keepdims=True) / n
                           - mean1 * mean1, 0.0)
        h = (h - mean1) * jax.lax.rsqrt(var1 + 1e-5) * bn1g_ref[...] + bn1b_ref[...]

        h_in2 = h
        h = jnp.dot(h.astype(cd), w1_ref[...],
                    preferred_element_type=jnp.float32) + b1_ref[...]
        h = jnp.maximum(h, 0.0)                                              # ReLU
        h = jnp.dot(h.astype(cd), w2_ref[...],
                    preferred_element_type=jnp.float32) + b2_ref[...]
        h = h_in2 + h                                                        # residual 2

        mean2 = jnp.sum(h, axis=0, keepdims=True) / n
        var2 = jnp.maximum(jnp.sum(h * h, axis=0, keepdims=True) / n
                           - mean2 * mean2, 0.0)
        o_ref[...] = ((h - mean2) * jax.lax.rsqrt(var2 + 1e-5) * bn2g_ref[...]
                      + bn2b_ref[...]).astype(o_ref.dtype)


# --------------------------------------------------------------------------
# Python wrapper
# --------------------------------------------------------------------------
def san_layer_forward(x, edge_attr, edge_index, params, num_heads,
                      *, edge_block=128, compute_dtype=jnp.bfloat16):
    n, cin = x.shape
    d = params["wq"].shape[1]
    dh = d // num_heads
    n_edges = edge_index.shape[1]

    assert edge_block % 8 == 0, "edge_block must be a multiple of 8"
    num_blocks = max(1, pl.cdiv(n_edges, edge_block))
    e_pad = num_blocks * edge_block
    pad = e_pad - n_edges

    cd = jnp.dtype(compute_dtype)
    inv_sqrt_dh = float(1.0 / np.sqrt(dh))

    # Pad edge arrays; padded edges point at the out-of-range node `n`
    # (all-zero selector row -> contributes nothing to the scatter).
    src = jnp.concatenate([edge_index[0].astype(jnp.int32),
                           jnp.full((pad,), n, jnp.int32)]).reshape(e_pad, 1)
    dst = jnp.concatenate([edge_index[1].astype(jnp.int32),
                           jnp.full((pad,), n, jnp.int32)]).reshape(e_pad, 1)
    ea = jnp.concatenate(
        [edge_attr, jnp.zeros((pad, cin), edge_attr.dtype)], axis=0).astype(cd)

    # (D, D) block-diagonal ones mask: per-head sum broadcast across head lanes.
    head_id = np.repeat(np.arange(num_heads), dh)
    hmask = jnp.asarray(
        (head_id[:, None] == head_id[None, :]).astype(np.float32))

    x_c = x.astype(cd)
    wq = params["wq"].astype(cd)
    wk = (params["wk"] * inv_sqrt_dh).astype(cd)   # fold 1/sqrt(d_head) into K
    we = params["we"].astype(cd)
    wv = params["wv"].astype(cd)
    wo = params["wo"].astype(cd)
    w1 = params["w1"].astype(cd)
    w2 = params["w2"].astype(cd)

    args = (src, dst, x_c, ea, wq, wk, we, wv, hmask,
            wo, params["bo"], params["bn1g"], params["bn1b"],
            w1, params["b1"], w2, params["b2"],
            params["bn2g"], params["bn2b"])

    def edge_spec(shape):
        nrest = len(shape) - 1
        return pl.BlockSpec((edge_block,) + tuple(shape[1:]),
                            lambda i, _nr=nrest: (i,) + (0,) * _nr)

    def resident_spec(shape):
        nd = len(shape)
        return pl.BlockSpec(tuple(shape), lambda i, _nd=nd: (0,) * _nd)

    in_specs = [
        edge_spec(src.shape), edge_spec(dst.shape),
        resident_spec(x_c.shape), edge_spec(ea.shape),
        resident_spec(wq.shape), resident_spec(wk.shape),
        resident_spec(we.shape), resident_spec(wv.shape),
        resident_spec(hmask.shape),
        resident_spec(wo.shape), resident_spec(params["bo"].shape),
        resident_spec(params["bn1g"].shape), resident_spec(params["bn1b"].shape),
        resident_spec(w1.shape), resident_spec(params["b1"].shape),
        resident_spec(w2.shape), resident_spec(params["b2"].shape),
        resident_spec(params["bn2g"].shape), resident_spec(params["bn2b"].shape),
    ]

    kern = functools.partial(
        _san_fused_kernel,
        num_nodes=n,
        approx_recip=bool(cd != jnp.dtype(jnp.float32)))

    return pl.pallas_call(
        kern,
        grid=(num_blocks,),
        in_specs=in_specs,
        out_specs=resident_spec((n, d)),
        out_shape=jax.ShapeDtypeStruct((n, d), jnp.float32),
        scratch_shapes=[
            pltpu.VMEM((n, d), cd),            # Q_h
            pltpu.VMEM((n, d), cd),            # K_h (pre-scaled)
            pltpu.VMEM((n, d), cd),            # V_h
            pltpu.VMEM((n, d), jnp.float32),   # wV accumulator
            pltpu.VMEM((n, d), jnp.float32),   # Z accumulator (broadcast per head)
        ],
        compiler_params=pltpu.CompilerParams(
            dimension_semantics=("arbitrary",)),
    )(*args)


# --------------------------------------------------------------------------
# Pure-JAX reference (edge-list semantics, mirrors the PyTorch module)
# --------------------------------------------------------------------------
def san_layer_reference(x, edge_attr, edge_index, params, num_heads):
    n = x.shape[0]
    d = params["wq"].shape[1]
    dh = d // num_heads
    src, dst = edge_index[0], edge_index[1]

    q_h = (x @ params["wq"]).reshape(n, num_heads, dh)
    k_h = (x @ params["wk"]).reshape(n, num_heads, dh)
    v_h = (x @ params["wv"]).reshape(n, num_heads, dh)
    e_h = (edge_attr @ params["we"]).reshape(-1, num_heads, dh)

    score = (k_h[src] * q_h[dst]) / np.sqrt(dh)
    score = score * e_h
    score = jnp.exp(jnp.clip(score.sum(-1, keepdims=True), -5.0, 5.0))
    msg = v_h[src] * score
    w_v = jax.ops.segment_sum(msg, dst, num_segments=n)
    z = jax.ops.segment_sum(score, dst, num_segments=n)
    h = (w_v / (z + 1e-6)).reshape(n, d)

    h = h @ params["wo"] + params["bo"][0]
    h = x + h
    m1 = h.mean(0); v1 = ((h - m1) ** 2).mean(0)
    h = (h - m1) / jnp.sqrt(v1 + 1e-5) * params["bn1g"][0] + params["bn1b"][0]
    h_in2 = h
    h = jnp.maximum(h @ params["w1"] + params["b1"][0], 0.0)
    h = h @ params["w2"] + params["b2"][0]
    h = h_in2 + h
    m2 = h.mean(0); v2 = ((h - m2) ** 2).mean(0)
    return (h - m2) / jnp.sqrt(v2 + 1e-5) * params["bn2g"][0] + params["bn2b"][0]


# --------------------------------------------------------------------------
if __name__ == "__main__":
    N, E_EDGES, IN_DIM, OUT_DIM, HEADS = 16, 50, 32, 32, 4

    key = jax.random.PRNGKey(0)
    ks = jax.random.split(key, 20)

    x = jax.random.normal(ks[0], (N, IN_DIM), jnp.float32)
    edge_attr = jax.random.normal(ks[1], (E_EDGES, IN_DIM), jnp.float32)
    edge_index = jnp.stack([
        jax.random.randint(ks[2], (E_EDGES,), 0, N),
        jax.random.randint(ks[3], (E_EDGES,), 0, N),
    ])

    def lin(k, fan_in, fan_out, scale=0.2):
        return scale * jax.random.normal(k, (fan_in, fan_out), jnp.float32)

    params = {
        # attention projections (nn.Linear, bias=False), stored as (in, out)
        "wq": lin(ks[4], IN_DIM, OUT_DIM),
        "wk": lin(ks[5], IN_DIM, OUT_DIM),
        "we": lin(ks[6], IN_DIM, OUT_DIM),
        "wv": lin(ks[7], IN_DIM, OUT_DIM),
        # O_h
        "wo": lin(ks[8], OUT_DIM, OUT_DIM),
        "bo": 0.05 * jax.random.normal(ks[9], (1, OUT_DIM), jnp.float32),
        # BatchNorm1d #1
        "bn1g": 1.0 + 0.1 * jax.random.normal(ks[10], (1, OUT_DIM), jnp.float32),
        "bn1b": 0.05 * jax.random.normal(ks[11], (1, OUT_DIM), jnp.float32),
        # FFN
        "w1": lin(ks[12], OUT_DIM, 2 * OUT_DIM),
        "b1": 0.05 * jax.random.normal(ks[13], (1, 2 * OUT_DIM), jnp.float32),
        "w2": lin(ks[14], 2 * OUT_DIM, OUT_DIM),
        "b2": 0.05 * jax.random.normal(ks[15], (1, OUT_DIM), jnp.float32),
        # BatchNorm1d #2
        "bn2g": 1.0 + 0.1 * jax.random.normal(ks[16], (1, OUT_DIM), jnp.float32),
        "bn2b": 0.05 * jax.random.normal(ks[17], (1, OUT_DIM), jnp.float32),
    }

    ref = jax.block_until_ready(
        san_layer_reference(x, edge_attr, edge_index, params, HEADS))

    # edge_block=16 -> 4 grid steps (init / accumulate / finalize) + padding
    # exercised.  f32 run validates exact semantics; bf16 run is the
    # performance configuration (bf16 MXU operands, f32 accumulation).
    for cdt, tol in ((jnp.float32, 2e-3), (jnp.bfloat16, 5e-2)):
        out = san_layer_forward(x, edge_attr, edge_index, params, HEADS,
                                edge_block=16, compute_dtype=cdt)
        out = jax.block_until_ready(out)
        assert out.shape == (N, OUT_DIM)
        assert np.all(np.isfinite(np.asarray(out)))
        np.testing.assert_allclose(np.asarray(out), np.asarray(ref),
                                   rtol=tol, atol=tol)

    print("KERNEL_OK")
</pallas_src>

<mosaic_0001>
module attributes {stable_mosaic.version = 11 : i64} {
  func.func @_san_fused_kernel(%arg0: i32, %arg1: memref<16x1xi32, #tpu.memory_space<vmem>>, %arg2: memref<16x1xi32, #tpu.memory_space<vmem>>, %arg3: memref<16x32xf32, #tpu.memory_space<vmem>>, %arg4: memref<16x32xf32, #tpu.memory_space<vmem>>, %arg5: memref<32x32xf32, #tpu.memory_space<vmem>>, %arg6: memref<32x32xf32, #tpu.memory_space<vmem>>, %arg7: memref<32x32xf32, #tpu.memory_space<vmem>>, %arg8: memref<32x32xf32, #tpu.memory_space<vmem>>, %arg9: memref<32x32xf32, #tpu.memory_space<vmem>>, %arg10: memref<32x32xf32, #tpu.memory_space<vmem>>, %arg11: memref<1x32xf32, #tpu.memory_space<vmem>>, %arg12: memref<1x32xf32, #tpu.memory_space<vmem>>, %arg13: memref<1x32xf32, #tpu.memory_space<vmem>>, %arg14: memref<32x64xf32, #tpu.memory_space<vmem>>, %arg15: memref<1x64xf32, #tpu.memory_space<vmem>>, %arg16: memref<64x32xf32, #tpu.memory_space<vmem>>, %arg17: memref<1x32xf32, #tpu.memory_space<vmem>>, %arg18: memref<1x32xf32, #tpu.memory_space<vmem>>, %arg19: memref<1x32xf32, #tpu.memory_space<vmem>>, %arg20: memref<16x32xf32, #tpu.memory_space<vmem>>, %arg21: memref<16x32xf32, #tpu.memory_space<vmem>>, %arg22: memref<16x32xf32, #tpu.memory_space<vmem>>, %arg23: memref<16x32xf32, #tpu.memory_space<vmem>>, %arg24: memref<16x32xf32, #tpu.memory_space<vmem>>, %arg25: memref<16x32xf32, #tpu.memory_space<vmem>>) attributes {dimension_semantics = [#tpu.dimension_semantics<arbitrary>], iteration_bounds = array<i64: 4>, scalar_prefetch = 0 : i64, scratch_operands = 5 : i64, tpu.core_type = #tpu.core_type<tc>, window_params = [{transform_indices = @transform_0, window_bounds = array<i64: 16, 1>}, {transform_indices = @transform_1, window_bounds = array<i64: 16, 1>}, {pipeline_mode = #tpu.pipeline_mode<synchronous>, transform_indices = @transform_2, window_bounds = array<i64: 16, 32>}, {transform_indices = @transform_3, window_bounds = array<i64: 16, 32>}, {pipeline_mode = #tpu.pipeline_mode<synchronous>, transform_indices = @transform_4, window_bounds = array<i64: 32, 32>}, {pipeline_mode = #tpu.pipeline_mode<synchronous>, transform_indices = @transform_5, window_bounds = array<i64: 32, 32>}, {pipeline_mode = #tpu.pipeline_mode<synchronous>, transform_indices = @transform_6, window_bounds = array<i64: 32, 32>}, {pipeline_mode = #tpu.pipeline_mode<synchronous>, transform_indices = @transform_7, window_bounds = array<i64: 32, 32>}, {pipeline_mode = #tpu.pipeline_mode<synchronous>, transform_indices = @transform_8, window_bounds = array<i64: 32, 32>}, {pipeline_mode = #tpu.pipeline_mode<synchronous>, transform_indices = @transform_9, window_bounds = array<i64: 32, 32>}, {pipeline_mode = #tpu.pipeline_mode<synchronous>, transform_indices = @transform_10, window_bounds = array<i64: 1, 32>}, {pipeline_mode = #tpu.pipeline_mode<synchronous>, transform_indices = @transform_11, window_bounds = array<i64: 1, 32>}, {pipeline_mode = #tpu.pipeline_mode<synchronous>, transform_indices = @transform_12, window_bounds = array<i64: 1, 32>}, {pipeline_mode = #tpu.pipeline_mode<synchronous>, transform_indices = @transform_13, window_bounds = array<i64: 32, 64>}, {pipeline_mode = #tpu.pipeline_mode<synchronous>, transform_indices = @transform_14, window_bounds = array<i64: 1, 64>}, {pipeline_mode = #tpu.pipeline_mode<synchronous>, transform_indices = @transform_15, window_bounds = array<i64: 64, 32>}, {pipeline_mode = #tpu.pipeline_mode<synchronous>, transform_indices = @transform_16, window_bounds = array<i64: 1, 32>}, {pipeline_mode = #tpu.pipeline_mode<synchronous>, transform_indices = @transform_17, window_bounds = array<i64: 1, 32>}, {pipeline_mode = #tpu.pipeline_mode<synchronous>, transform_indices = @transform_18, window_bounds = array<i64: 1, 32>}, {pipeline_mode = #tpu.pipeline_mode<synchronous>, transform_indices = @transform_19, window_bounds = array<i64: 16, 32>}]} {
    %c0_i32 = arith.constant 0 : i32
    %0 = arith.cmpi eq, %arg0, %c0_i32 : i32
    %1 = arith.extui %0 : i1 to i32
    %c0_i32_0 = arith.constant 0 : i32
    %2 = arith.cmpi ne, %1, %c0_i32_0 : i32
    scf.if %2 {
      %c0_33 = arith.constant 0 : index
      %c0_34 = arith.constant 0 : index
      %44 = vector.load %arg3[%c0_33, %c0_34] : memref<16x32xf32, #tpu.memory_space<vmem>>, vector<16x32xf32>
      %c0_35 = arith.constant 0 : index
      %c0_36 = arith.constant 0 : index
      %45 = vector.load %arg5[%c0_35, %c0_36] : memref<32x32xf32, #tpu.memory_space<vmem>>, vector<32x32xf32>
      %cst_37 = arith.constant dense<0.000000e+00> : vector<16x32xf32>
      %46 = tpu.matmul %44, %45, %cst_37 {dimension_numbers = #tpu.dot_dimension_numbers<[1], [0], [0], [1], [0, 0, 1, 1], [], []>} : vector<16x32xf32>, vector<32x32xf32>, vector<16x32xf32> -> vector<16x32xf32>
      %c0_38 = arith.constant 0 : index
      %c0_39 = arith.constant 0 : index
      %47 = vector.load %arg21[%c0_38, %c0_39] : memref<16x32xf32, #tpu.memory_space<vmem>>, vector<16x32xf32>
      tpu.vector_store %arg21[%c0_38, %c0_39], %46 {strides = array<i32>} : memref<16x32xf32, #tpu.memory_space<vmem>>, vector<16x32xf32>,
      %c0_40 = arith.constant 0 : index
      %c0_41 = arith.constant 0 : index
      %48 = vector.load %arg6[%c0_40, %c0_41] : memref<32x32xf32, #tpu.memory_space<vmem>>, vector<32x32xf32>
      %cst_42 = arith.constant dense<0.000000e+00> : vector<16x32xf32>
      %49 = tpu.matmul %44, %48, %cst_42 {dimension_numbers = #tpu.dot_dimension_numbers<[1], [0], [0], [1], [0, 0, 1, 1], [], []>} : vector<16x32xf32>, vector<32x32xf32>, vector<16x32xf32> -> vector<16x32xf32>
      %c0_43 = arith.constant 0 : index
      %c0_44 = arith.constant 0 : index
      %50 = vector.load %arg22[%c0_43, %c0_44] : memref<16x32xf32, #tpu.memory_space<vmem>>, vector<16x32xf32>
      tpu.vector_store %arg22[%c0_43, %c0_44], %49 {strides = array<i32>} : memref<16x32xf32, #tpu.memory_space<vmem>>, vector<16x32xf32>,
      %c0_45 = arith.constant 0 : index
      %c0_46 = arith.constant 0 : index
      %51 = vector.load %arg8[%c0_45, %c0_46] : memref<32x32xf32, #tpu.memory_space<vmem>>, vector<32x32xf32>
      %cst_47 = arith.constant dense<0.000000e+00> : vector<16x32xf32>
      %52 = tpu.matmul %44, %51, %cst_47 {dimension_numbers = #tpu.dot_dimension_numbers<[1], [0], [0], [1], [0, 0, 1, 1], [], []>} : vector<16x32xf32>, vector<32x32xf32>, vector<16x32xf32> -> vector<16x32xf32>
      %c0_48 = arith.constant 0 : index
      %c0_49 = arith.constant 0 : index
      %53 = vector.load %arg23[%c0_48, %c0_49] : memref<16x32xf32, #tpu.memory_space<vmem>>, vector<16x32xf32>
      tpu.vector_store %arg23[%c0_48, %c0_49], %52 {strides = array<i32>} : memref<16x32xf32, #tpu.memory_space<vmem>>, vector<16x32xf32>,
      %cst_50 = arith.constant 0.000000e+00 : f32
      %54 = vector.broadcast %cst_50 : f32 to vector<16x32xf32>
      %c0_51 = arith.constant 0 : index
      %c0_52 = arith.constant 0 : index
      %55 = vector.load %arg24[%c0_51, %c0_52] : memref<16x32xf32, #tpu.memory_space<vmem>>, vector<16x32xf32>
      tpu.vector_store %arg24[%c0_51, %c0_52], %54 {strides = array<i32>} : memref<16x32xf32, #tpu.memory_space<vmem>>, vector<16x32xf32>,
      %cst_53 = arith.constant 0.000000e+00 : f32
      %56 = vector.broadcast %cst_53 : f32 to vector<16x32xf32>
      %c0_54 = arith.constant 0 : index
      %c0_55 = arith.constant 0 : index
      %57 = vector.load %arg25[%c0_54, %c0_55] : memref<16x32xf32, #tpu.memory_space<vmem>>, vector<16x32xf32>
      tpu.vector_store %arg25[%c0_54, %c0_55], %56 {strides = array<i32>} : memref<16x32xf32, #tpu.memory_space<vmem>>, vector<16x32xf32>,
    } else {
    }
    %3 = tpu.iota {dimensions = array<i32: 1>} : vector<16x16xi32>
    %c0 = arith.constant 0 : index
    %c0_1 = arith.constant 0 : index
    %4 = vector.load %arg1[%c0, %c0_1] : memref<16x1xi32, #tpu.memory_space<vmem>>, vector<16x1xi32>
    %5 = vector.broadcast %4 : vector<16x1xi32> to vector<16x16xi32>
    %6 = arith.cmpi eq, %5, %3 : vector<16x16xi32>
    %7 = arith.extui %6 : vector<16x16xi1> to vector<16x16xi32>
    %8 = arith.sitofp %7 : vector<16x16xi32> to vector<16x16xf32>
    %c0_2 = arith.constant 0 : index
    %c0_3 = arith.constant 0 : index
    %9 = vector.load %arg2[%c0_2, %c0_3] : memref<16x1xi32, #tpu.memory_space<vmem>>, vector<16x1xi32>
    %10 = vector.broadcast %9 : vector<16x1xi32> to vector<16x16xi32>
    %11 = arith.cmpi eq, %10, %3 : vector<16x16xi32>
    %12 = arith.extui %11 : vector<16x16xi1> to vector<16x16xi32>
    %13 = arith.sitofp %12 : vector<16x16xi32> to vector<16x16xf32>
    %c0_4 = arith.constant 0 : index
    %c0_5 = arith.constant 0 : index
    %14 = vector.load %arg22[%c0_4, %c0_5] : memref<16x32xf32, #tpu.memory_space<vmem>>, vector<16x32xf32>
    %cst = arith.constant dense<0.000000e+00> : vector<16x32xf32>
    %15 = tpu.matmul %8, %14, %cst {dimension_numbers = #tpu.dot_dimension_numbers<[1], [0], [0], [1], [0, 0, 1, 1], [], []>} : vector<16x16xf32>, vector<16x32xf32>, vector<16x32xf32> -> vector<16x32xf32>
    %c0_6 = arith.constant 0 : index
    %c0_7 = arith.constant 0 : index
    %16 = vector.load %arg21[%c0_6, %c0_7] : memref<16x32xf32, #tpu.memory_space<vmem>>, vector<16x32xf32>
    %cst_8 = arith.constant dense<0.000000e+00> : vector<16x32xf32>
    %17 = tpu.matmul %13, %16, %cst_8 {dimension_numbers = #tpu.dot_dimension_numbers<[1], [0], [0], [1], [0, 0, 1, 1], [], []>} : vector<16x16xf32>, vector<16x32xf32>, vector<16x32xf32> -> vector<16x32xf32>
    %c0_9 = arith.constant 0 : index
    %c0_10 = arith.constant 0 : index
    %18 = vector.load %arg23[%c0_9, %c0_10] : memref<16x32xf32, #tpu.memory_space<vmem>>, vector<16x32xf32>
    %cst_11 = arith.constant dense<0.000000e+00> : vector<16x32xf32>
    %19 = tpu.matmul %8, %18, %cst_11 {dimension_numbers = #tpu.dot_dimension_numbers<[1], [0], [0], [1], [0, 0, 1, 1], [], []>} : vector<16x16xf32>, vector<16x32xf32>, vector<16x32xf32> -> vector<16x32xf32>
    %c0_12 = arith.constant 0 : index
    %c0_13 = arith.constant 0 : index
    %20 = vector.load %arg4[%c0_12, %c0_13] : memref<16x32xf32, #tpu.memory_space<vmem>>, vector<16x32xf32>
    %c0_14 = arith.constant 0 : index
    %c0_15 = arith.constant 0 : index
    %21 = vector.load %arg7[%c0_14, %c0_15] : memref<32x32xf32, #tpu.memory_space<vmem>>, vector<32x32xf32>
    %cst_16 = arith.constant dense<0.000000e+00> : vector<16x32xf32>
    %22 = tpu.matmul %20, %21, %cst_16 {dimension_numbers = #tpu.dot_dimension_numbers<[1], [0], [0], [1], [0, 0, 1, 1], [], []>} : vector<16x32xf32>, vector<32x32xf32>, vector<16x32xf32> -> vector<16x32xf32>
    %23 = arith.mulf %15, %17 : vector<16x32xf32>
    %24 = arith.mulf %23, %22 : vector<16x32xf32>
    %c0_17 = arith.constant 0 : index
    %c0_18 = arith.constant 0 : index
    %25 = vector.load %arg9[%c0_17, %c0_18] : memref<32x32xf32, #tpu.memory_space<vmem>>, vector<32x32xf32>
    %cst_19 = arith.constant dense<0.000000e+00> : vector<16x32xf32>
    %26 = tpu.matmul %24, %25, %cst_19 {dimension_numbers = #tpu.dot_dimension_numbers<[1], [0], [0], [1], [0, 0, 1, 1], [], []>} : vector<16x32xf32>, vector<32x32xf32>, vector<16x32xf32> -> vector<16x32xf32>
    %cst_20 = arith.constant -5.000000e+00 : f32
    %cst_21 = arith.constant 5.000000e+00 : f32
    %27 = vector.broadcast %cst_20 : f32 to vector<16x32xf32>
    %28 = arith.maximumf %27, %26 : vector<16x32xf32>
    %29 = vector.broadcast %cst_21 : f32 to vector<16x32xf32>
    %30 = arith.minimumf %29, %28 : vector<16x32xf32>
    %31 = math.exp %30 : vector<16x32xf32>
    %32 = arith.mulf %19, %31 : vector<16x32xf32>
    %c0_22 = arith.constant 0 : index
    %c0_23 = arith.constant 0 : index
    %33 = vector.load %arg24[%c0_22, %c0_23] : memref<16x32xf32, #tpu.memory_space<vmem>>, vector<16x32xf32>
    %cst_24 = arith.constant dense<0.000000e+00> : vector<16x32xf32>
    %34 = tpu.matmul %13, %32, %cst_24 {dimension_numbers = #tpu.dot_dimension_numbers<[0], [0], [1], [1], [0, 1, 1, 1], [], []>} : vector<16x16xf32>, vector<16x32xf32>, vector<16x32xf32> -> vector<16x32xf32>
    %35 = arith.addf %33, %34 : vector<16x32xf32>
    %c0_25 = arith.constant 0 : index
    %c0_26 = arith.constant 0 : index
    %36 = vector.load %arg24[%c0_25, %c0_26] : memref<16x32xf32, #tpu.memory_space<vmem>>, vector<16x32xf32>
    tpu.vector_store %arg24[%c0_25, %c0_26], %35 {strides = array<i32>} : memref<16x32xf32, #tpu.memory_space<vmem>>, vector<16x32xf32>,
    %c0_27 = arith.constant 0 : index
    %c0_28 = arith.constant 0 : index
    %37 = vector.load %arg25[%c0_27, %c0_28] : memref<16x32xf32, #tpu.memory_space<vmem>>, vector<16x32xf32>
    %cst_29 = arith.constant dense<0.000000e+00> : vector<16x32xf32>
    %38 = tpu.matmul %13, %31, %cst_29 {dimension_numbers = #tpu.dot_dimension_numbers<[0], [0], [1], [1], [0, 1, 1, 1], [], []>} : vector<16x16xf32>, vector<16x32xf32>, vector<16x32xf32> -> vector<16x32xf32>
    %39 = arith.addf %37, %38 : vector<16x32xf32>
    %c0_30 = arith.constant 0 : index
    %c0_31 = arith.constant 0 : index
    %40 = vector.load %arg25[%c0_30, %c0_31] : memref<16x32xf32, #tpu.memory_space<vmem>>, vector<16x32xf32>
    tpu.vector_store %arg25[%c0_30, %c0_31], %39 {strides = array<i32>} : memref<16x32xf32, #tpu.memory_space<vmem>>, vector<16x32xf32>,
    %c3_i32 = arith.constant 3 : i32
    %41 = arith.cmpi eq, %arg0, %c3_i32 : i32
    %42 = arith.extui %41 : i1 to i32
    %c0_i32_32 = arith.constant 0 : i32
    %43 = arith.cmpi ne, %42, %c0_i32_32 : i32
    scf.if %43 {
      %c0_33 = arith.constant 0 : index
      %c0_34 = arith.constant 0 : index
      %44 = vector.load %arg24[%c0_33, %c0_34] : memref<16x32xf32, #tpu.memory_space<vmem>>, vector<16x32xf32>
      %c0_35 = arith.constant 0 : index
      %c0_36 = arith.constant 0 : index
      %45 = vector.load %arg25[%c0_35, %c0_36] : memref<16x32xf32, #tpu.memory_space<vmem>>, vector<16x32xf32>
      %cst_37 = arith.constant 9.99999997E-7 : f32
      %46 = vector.broadcast %cst_37 : f32 to vector<16x32xf32>
      %47 = arith.addf %45, %46 : vector<16x32xf32>
      %48 = tpu.reciprocal %47 : vector<16x32xf32> -> vector<16x32xf32>
      %49 = arith.mulf %44, %48 : vector<16x32xf32>
      %c0_38 = arith.constant 0 : index
      %c0_39 = arith.constant 0 : index
      %50 = vector.load %arg10[%c0_38, %c0_39] : memref<32x32xf32, #tpu.memory_space<vmem>>, vector<32x32xf32>
      %cst_40 = arith.constant dense<0.000000e+00> : vector<16x32xf32>
      %51 = tpu.matmul %49, %50, %cst_40 {dimension_numbers = #tpu.dot_dimension_numbers<[1], [0], [0], [1], [0, 0, 1, 1], [], []>} : vector<16x32xf32>, vector<32x32xf32>, vector<16x32xf32> -> vector<16x32xf32>
      %c0_41 = arith.constant 0 : index
      %c0_42 = arith.constant 0 : index
      %52 = vector.load %arg11[%c0_41, %c0_42] : memref<1x32xf32, #tpu.memory_space<vmem>>, vector<1x32xf32>
      %53 = vector.broadcast %52 : vector<1x32xf32> to vector<16x32xf32>
      %54 = arith.addf %51, %53 : vector<16x32xf32>
      %c0_43 = arith.constant 0 : index
      %c0_44 = arith.constant 0 : index
      %55 = vector.load %arg3[%c0_43, %c0_44] : memref<16x32xf32, #tpu.memory_space<vmem>>, vector<16x32xf32>
      %56 = arith.addf %55, %54 : vector<16x32xf32>
      %cst_45 = arith.constant dense<0.000000e+00> : vector<32xf32>
      %57 = vector.multi_reduction <add>, %56, %cst_45 [0] : vector<16x32xf32> to vector<32xf32>
      %58 = vector.shape_cast %57 : vector<32xf32> to vector<1x32xf32>
      %cst_46 = arith.constant 1.600000e+01 : f32
      %59 = vector.broadcast %cst_46 : f32 to vector<1x32xf32>
      %60 = arith.divf %58, %59 : vector<1x32xf32>
      %61 = arith.mulf %56, %56 : vector<16x32xf32>
      %cst_47 = arith.constant dense<0.000000e+00> : vector<32xf32>
      %62 = vector.multi_reduction <add>, %61, %cst_47 [0] : vector<16x32xf32> to vector<32xf32>
      %63 = vector.shape_cast %62 : vector<32xf32> to vector<1x32xf32>
      %cst_48 = arith.constant 1.600000e+01 : f32
      %64 = vector.broadcast %cst_48 : f32 to vector<1x32xf32>
      %65 = arith.divf %63, %64 : vector<1x32xf32>
      %66 = arith.mulf %60, %60 : vector<1x32xf32>
      %67 = arith.subf %65, %66 : vector<1x32xf32>
      %cst_49 = arith.constant 0.000000e+00 : f32
      %68 = vector.broadcast %cst_49 : f32 to vector<1x32xf32>
      %69 = arith.maximumf %67, %68 : vector<1x32xf32>
      %70 = vector.broadcast %60 : vector<1x32xf32> to vector<16x32xf32>
      %71 = arith.subf %56, %70 : vector<16x32xf32>
      %cst_50 = arith.constant 9.99999974E-6 : f32
      %72 = vector.broadcast %cst_50 : f32 to vector<1x32xf32>
      %73 = arith.addf %69, %72 : vector<1x32xf32>
      %74 = math.rsqrt %73 : vector<1x32xf32>
      %75 = vector.broadcast %74 : vector<1x32xf32> to vector<16x32xf32>
      %76 = arith.mulf %71, %75 : vector<16x32xf32>
      %c0_51 = arith.constant 0 : index
      %c0_52 = arith.constant 0 : index
      %77 = vector.load %arg12[%c0_51, %c0_52] : memref<1x32xf32, #tpu.memory_space<vmem>>, vector<1x32xf32>
      %78 = vector.broadcast %77 : vector<1x32xf32> to vector<16x32xf32>
      %79 = arith.mulf %76, %78 : vector<16x32xf32>
      %c0_53 = arith.constant 0 : index
      %c0_54 = arith.constant 0 : index
      %80 = vector.load %arg13[%c0_53, %c0_54] : memref<1x32xf32, #tpu.memory_space<vmem>>, vector<1x32xf32>
      %81 = vector.broadcast %80 : vector<1x32xf32> to vector<16x32xf32>
      %82 = arith.addf %79, %81 : vector<16x32xf32>
      %c0_55 = arith.constant 0 : index
      %c0_56 = arith.constant 0 : index
      %83 = vector.load %arg14[%c0_55, %c0_56] : memref<32x64xf32, #tpu.memory_space<vmem>>, vector<32x64xf32>
      %cst_57 = arith.constant dense<0.000000e+00> : vector<16x64xf32>
      %84 = tpu.matmul %82, %83, %cst_57 {dimension_numbers = #tpu.dot_dimension_numbers<[1], [0], [0], [1], [0, 0, 1, 1], [], []>} : vector<16x32xf32>, vector<32x64xf32>, vector<16x64xf32> -> vector<16x64xf32>
      %c0_58 = arith.constant 0 : index
      %c0_59 = arith.constant 0 : index
      %85 = vector.load %arg15[%c0_58, %c0_59] : memref<1x64xf32, #tpu.memory_space<vmem>>, vector<1x64xf32>
      %86 = vector.broadcast %85 : vector<1x64xf32> to vector<16x64xf32>
      %87 = arith.addf %84, %86 : vector<16x64xf32>
      %cst_60 = arith.constant 0.000000e+00 : f32
      %88 = vector.broadcast %cst_60 : f32 to vector<16x64xf32>
      %89 = arith.maximumf %87, %88 : vector<16x64xf32>
      %c0_61 = arith.constant 0 : index
      %c0_62 = arith.constant 0 : index
      %90 = vector.load %arg16[%c0_61, %c0_62] : memref<64x32xf32, #tpu.memory_space<vmem>>, vector<64x32xf32>
      %cst_63 = arith.constant dense<0.000000e+00> : vector<16x32xf32>
      %91 = tpu.matmul %89, %90, %cst_63 {dimension_numbers = #tpu.dot_dimension_numbers<[1], [0], [0], [1], [0, 0, 1, 1], [], []>} : vector<16x64xf32>, vector<64x32xf32>, vector<16x32xf32> -> vector<16x32xf32>
      %c0_64 = arith.constant 0 : index
      %c0_65 = arith.constant 0 : index
      %92 = vector.load %arg17[%c0_64, %c0_65] : memref<1x32xf32, #tpu.memory_space<vmem>>, vector<1x32xf32>
      %93 = vector.broadcast %92 : vector<1x32xf32> to vector<16x32xf32>
      %94 = arith.addf %91, %93 : vector<16x32xf32>
      %95 = arith.addf %82, %94 : vector<16x32xf32>
      %cst_66 = arith.constant dense<0.000000e+00> : vector<32xf32>
      %96 = vector.multi_reduction <add>, %95, %cst_66 [0] : vector<16x32xf32> to vector<32xf32>
      %97 = vector.shape_cast %96 : vector<32xf32> to vector<1x32xf32>
      %cst_67 = arith.constant 1.600000e+01 : f32
      %98 = vector.broadcast %cst_67 : f32 to vector<1x32xf32>
      %99 = arith.divf %97, %98 : vector<1x32xf32>
      %100 = arith.mulf %95, %95 : vector<16x32xf32>
      %cst_68 = arith.constant dense<0.000000e+00> : vector<32xf32>
      %101 = vector.multi_reduction <add>, %100, %cst_68 [0] : vector<16x32xf32> to vector<32xf32>
      %102 = vector.shape_cast %101 : vector<32xf32> to vector<1x32xf32>
      %cst_69 = arith.constant 1.600000e+01 : f32
      %103 = vector.broadcast %cst_69 : f32 to vector<1x32xf32>
      %104 = arith.divf %102, %103 : vector<1x32xf32>
      %105 = arith.mulf %99, %99 : vector<1x32xf32>
      %106 = arith.subf %104, %105 : vector<1x32xf32>
      %cst_70 = arith.constant 0.000000e+00 : f32
      %107 = vector.broadcast %cst_70 : f32 to vector<1x32xf32>
      %108 = arith.maximumf %106, %107 : vector<1x32xf32>
      %109 = vector.broadcast %99 : vector<1x32xf32> to vector<16x32xf32>
      %110 = arith.subf %95, %109 : vector<16x32xf32>
      %cst_71 = arith.constant 9.99999974E-6 : f32
      %111 = vector.broadcast %cst_71 : f32 to vector<1x32xf32>
      %112 = arith.addf %108, %111 : vector<1x32xf32>
      %113 = math.rsqrt %112 : vector<1x32xf32>
      %114 = vector.broadcast %113 : vector<1x32xf32> to vector<16x32xf32>
      %115 = arith.mulf %110, %114 : vector<16x32xf32>
      %c0_72 = arith.constant 0 : index
      %c0_73 = arith.constant 0 : index
      %116 = vector.load %arg18[%c0_72, %c0_73] : memref<1x32xf32, #tpu.memory_space<vmem>>, vector<1x32xf32>
      %117 = vector.broadcast %116 : vector<1x32xf32> to vector<16x32xf32>
      %118 = arith.mulf %115, %117 : vector<16x32xf32>
      %c0_74 = arith.constant 0 : index
      %c0_75 = arith.constant 0 : index
      %119 = vector.load %arg19[%c0_74, %c0_75] : memref<1x32xf32, #tpu.memory_space<vmem>>, vector<1x32xf32>
      %120 = vector.broadcast %119 : vector<1x32xf32> to vector<16x32xf32>
      %121 = arith.addf %118, %120 : vector<16x32xf32>
      %c0_76 = arith.constant 0 : index
      %c0_77 = arith.constant 0 : index
      %122 = vector.load %arg20[%c0_76, %c0_77] : memref<16x32xf32, #tpu.memory_space<vmem>>, vector<16x32xf32>
      tpu.vector_store %arg20[%c0_76, %c0_77], %121 {strides = array<i32>} : memref<16x32xf32, #tpu.memory_space<vmem>>, vector<16x32xf32>,
    } else {
    }
    return
  }
  func.func @transform_0(%arg0: i32) -> (i32, i32) {
    %c0_i32 = arith.constant 0 : i32
    %c0_i32_0 = arith.constant 0 : i32
    return %arg0, %c0_i32 : i32, i32
  }
  func.func @transform_1(%arg0: i32) -> (i32, i32) {
    %c0_i32 = arith.constant 0 : i32
    %c0_i32_0 = arith.constant 0 : i32
    return %arg0, %c0_i32 : i32, i32
  }
  func.func @transform_2(%arg0: i32) -> (i32, i32) {
    %c0_i32 = arith.constant 0 : i32
    %c0_i32_0 = arith.constant 0 : i32
    %c0_i32_1 = arith.constant 0 : i32
    return %c0_i32, %c0_i32_0 : i32, i32
  }
  func.func @transform_3(%arg0: i32) -> (i32, i32) {
    %c0_i32 = arith.constant 0 : i32
    %c0_i32_0 = arith.constant 0 : i32
    return %arg0, %c0_i32 : i32, i32
  }
  func.func @transform_4(%arg0: i32) -> (i32, i32) {
    %c0_i32 = arith.constant 0 : i32
    %c0_i32_0 = arith.constant 0 : i32
    %c0_i32_1 = arith.constant 0 : i32
    return %c0_i32, %c0_i32_0 : i32, i32
  }
  func.func @transform_5(%arg0: i32) -> (i32, i32) {
    %c0_i32 = arith.constant 0 : i32
    %c0_i32_0 = arith.constant 0 : i32
    %c0_i32_1 = arith.constant 0 : i32
    return %c0_i32, %c0_i32_0 : i32, i32
  }
  func.func @transform_6(%arg0: i32) -> (i32, i32) {
    %c0_i32 = arith.constant 0 : i32
    %c0_i32_0 = arith.constant 0 : i32
    %c0_i32_1 = arith.constant 0 : i32
    return %c0_i32, %c0_i32_0 : i32, i32
  }
  func.func @transform_7(%arg0: i32) -> (i32, i32) {
    %c0_i32 = arith.constant 0 : i32
    %c0_i32_0 = arith.constant 0 : i32
    %c0_i32_1 = arith.constant 0 : i32
    return %c0_i32, %c0_i32_0 : i32, i32
  }
  func.func @transform_8(%arg0: i32) -> (i32, i32) {
    %c0_i32 = arith.constant 0 : i32
    %c0_i32_0 = arith.constant 0 : i32
    %c0_i32_1 = arith.constant 0 : i32
    return %c0_i32, %c0_i32_0 : i32, i32
  }
  func.func @transform_9(%arg0: i32) -> (i32, i32) {
    %c0_i32 = arith.constant 0 : i32
    %c0_i32_0 = arith.constant 0 : i32
    %c0_i32_1 = arith.constant 0 : i32
    return %c0_i32, %c0_i32_0 : i32, i32
  }
  func.func @transform_10(%arg0: i32) -> (i32, i32) {
    %c0_i32 = arith.constant 0 : i32
    %c0_i32_0 = arith.constant 0 : i32
    %c0_i32_1 = arith.constant 0 : i32
    return %c0_i32, %c0_i32_0 : i32, i32
  }
  func.func @transform_11(%arg0: i32) -> (i32, i32) {
    %c0_i32 = arith.constant 0 : i32
    %c0_i32_0 = arith.constant 0 : i32
    %c0_i32_1 = arith.constant 0 : i32
    return %c0_i32, %c0_i32_0 : i32, i32
  }
  func.func @transform_12(%arg0: i32) -> (i32, i32) {
    %c0_i32 = arith.constant 0 : i32
    %c0_i32_0 = arith.constant 0 : i32
    %c0_i32_1 = arith.constant 0 : i32
    return %c0_i32, %c0_i32_0 : i32, i32
  }
  func.func @transform_13(%arg0: i32) -> (i32, i32) {
    %c0_i32 = arith.constant 0 : i32
    %c0_i32_0 = arith.constant 0 : i32
    %c0_i32_1 = arith.constant 0 : i32
    return %c0_i32, %c0_i32_0 : i32, i32
  }
  func.func @transform_14(%arg0: i32) -> (i32, i32) {
    %c0_i32 = arith.constant 0 : i32
    %c0_i32_0 = arith.constant 0 : i32
    %c0_i32_1 = arith.constant 0 : i32
    return %c0_i32, %c0_i32_0 : i32, i32
  }
  func.func @transform_15(%arg0: i32) -> (i32, i32) {
    %c0_i32 = arith.constant 0 : i32
    %c0_i32_0 = arith.constant 0 : i32
    %c0_i32_1 = arith.constant 0 : i32
    return %c0_i32, %c0_i32_0 : i32, i32
  }
  func.func @transform_16(%arg0: i32) -> (i32, i32) {
    %c0_i32 = arith.constant 0 : i32
    %c0_i32_0 = arith.constant 0 : i32
    %c0_i32_1 = arith.constant 0 : i32
    return %c0_i32, %c0_i32_0 : i32, i32
  }
  func.func @transform_17(%arg0: i32) -> (i32, i32) {
    %c0_i32 = arith.constant 0 : i32
    %c0_i32_0 = arith.constant 0 : i32
    %c0_i32_1 = arith.constant 0 : i32
    return %c0_i32, %c0_i32_0 : i32, i32
  }
  func.func @transform_18(%arg0: i32) -> (i32, i32) {
    %c0_i32 = arith.constant 0 : i32
    %c0_i32_0 = arith.constant 0 : i32
    %c0_i32_1 = arith.constant 0 : i32
    return %c0_i32, %c0_i32_0 : i32, i32
  }
  func.func @transform_19(%arg0: i32) -> (i32, i32) {
    %c0_i32 = arith.constant 0 : i32
    %c0_i32_0 = arith.constant 0 : i32
    %c0_i32_1 = arith.constant 0 : i32
    return %c0_i32, %c0_i32_0 : i32, i32
  }
}

</mosaic_0001>

<llo_original>
// kernel: tpu_custom_call.1
$region0: #{tpu_custom_call.1}
  #allocation0 [shape = 'u32[]', space=smem, size = 0x4, offset = 0x4, fixed_abs, tag = 'smem constant byte address 0x4 - core index']
  #allocation1 [shape = 'u32[72,128]{1,0:T(1,128)}', space=vmem, size = 0x9000, scoped, tag = 'internal scratch']
  #allocation2 [shape = 'f32[16,32]{1,0:T(8,128)}', space=vmem, size = 0x2000, scoped, tag = 'scratch operand']
  #allocation3 [shape = 'f32[16,32]{1,0:T(8,128)}', space=vmem, size = 0x2000, scoped, tag = 'scratch operand']
  #allocation4 [shape = 'f32[16,32]{1,0:T(8,128)}', space=vmem, size = 0x2000, scoped, tag = 'scratch operand']
  #allocation5 [shape = 'f32[16,32]{1,0:T(8,128)}', space=vmem, size = 0x2000, scoped, tag = 'scratch operand']
  #allocation6 [shape = 'f32[16,32]{1,0:T(8,128)}', space=vmem, size = 0x2000, scoped, tag = 'scratch operand']
  %s0 = inlined_call_operand.vmem [shape: s32[64,1], index: 0, kind: input, shape index: {}]
  %s1 = inlined_call_operand.vmem [shape: s32[64,1], index: 1, kind: input, shape index: {}]
  %s2 = inlined_call_operand.vmem [shape: f32[16,32], index: 2, kind: input, shape index: {}]
  %s3 = inlined_call_operand.vmem [shape: f32[64,32], index: 3, kind: input, shape index: {}]
  %s4 = inlined_call_operand.vmem [shape: f32[32,32], index: 4, kind: input, shape index: {}]
  %s5 = inlined_call_operand.vmem [shape: f32[32,32], index: 5, kind: input, shape index: {}]
  %s6 = inlined_call_operand.vmem [shape: f32[32,32], index: 6, kind: input, shape index: {}]
  %s7 = inlined_call_operand.vmem [shape: f32[32,32], index: 7, kind: input, shape index: {}]
  %s8 = inlined_call_operand.vmem [shape: f32[32,32], index: 8, kind: input, shape index: {}]
  %s9 = inlined_call_operand.vmem [shape: f32[32,32], index: 9, kind: input, shape index: {}]
  %s10 = inlined_call_operand.vmem [shape: f32[1,32], index: 10, kind: input, shape index: {}]
  %s11 = inlined_call_operand.vmem [shape: f32[1,32], index: 11, kind: input, shape index: {}]
  %s12 = inlined_call_operand.vmem [shape: f32[1,32], index: 12, kind: input, shape index: {}]
  %s13 = inlined_call_operand.vmem [shape: f32[32,64], index: 13, kind: input, shape index: {}]
  %s14 = inlined_call_operand.vmem [shape: f32[1,64], index: 14, kind: input, shape index: {}]
  %s15 = inlined_call_operand.vmem [shape: f32[64,32], index: 15, kind: input, shape index: {}]
  %s16 = inlined_call_operand.vmem [shape: f32[1,32], index: 16, kind: input, shape index: {}]
  %s17 = inlined_call_operand.vmem [shape: f32[1,32], index: 17, kind: input, shape index: {}]
  %s18 = inlined_call_operand.vmem [shape: f32[1,32], index: 18, kind: input, shape index: {}]
  %s19 = inlined_call_operand.hbm [shape: f32[16,32], index: 19, kind: output, shape index: {}]
  %s20 = sld [smem:[#allocation0]]
  $region117: #{tpu_custom_call.1} parent=0
    _
  %s22 = ssub.s32 1, %s20
  %s23 = scalar_select 0, %s22, %s20
  $region1: #{tpu_custom_call.1} parent=0
    #allocation7 [shape = 'u8[8192]{0}', space=vmem, size = 0x2000, scoped, tag = 'output window, operand 0, single buffered']
    #allocation8 [shape = 's32[2]{0}', space=sflag, size = 0x8, scoped, tag = 'scoped memory for tpu_custom_call.1']
    %24 = vsyncpa [#allocation8], 0
    loop: start=0, step=1, limit=6
    $region2: #{tpu_custom_call.1} parent=1 // loop_pre_header
      _
    $region3: #{tpu_custom_call.1} parent=1 // loop_header
      %s26 = sphi 0, %s30
      %p27 = scmp.ge.s32.totalorder %s26, 6
      %s36 = sphi 0, %s38
      %s39 = sphi 0, %s36
      %s40 = sphi 0, %s39
      %s56 = sphi 0, %s40
      %s62 = sphi 0, %s64
      %s65 = sphi 0, %s62
      %s66 = sphi 0, %s65
      %s82 = sphi 0, %s66
      %s86 = sphi 0, %s86
      %s88 = sphi 0, %s86
      %s89 = sphi 0, %s88
      %s103 = sphi 0, %s89
      %s109 = sphi 0, %s111
      %s112 = sphi 0, %s109
      %s113 = sphi 0, %s112
      %s129 = sphi 0, %s113
      %s133 = sphi 0, %s133
      %s135 = sphi 0, %s133
      %s136 = sphi 0, %s135
      %s150 = sphi 0, %s136
      %s154 = sphi 0, %s154
      %s156 = sphi 0, %s154
      %s157 = sphi 0, %s156
      %s171 = sphi 0, %s157
      %s175 = sphi 0, %s175
      %s177 = sphi 0, %s175
      %s178 = sphi 0, %s177
      %s192 = sphi 0, %s178
      %s196 = sphi 0, %s196
      %s198 = sphi 0, %s196
      %s199 = sphi 0, %s198
      %s213 = sphi 0, %s199
      %s217 = sphi 0, %s217
      %s219 = sphi 0, %s217
      %s220 = sphi 0, %s219
      %s234 = sphi 0, %s220
      %s238 = sphi 0, %s238
      %s240 = sphi 0, %s238
      %s241 = sphi 0, %s240
      %s255 = sphi 0, %s241
      %s259 = sphi 0, %s259
      %s261 = sphi 0, %s259
      %s262 = sphi 0, %s261
      %s276 = sphi 0, %s262
      %s280 = sphi 0, %s280
      %s282 = sphi 0, %s280
      %s283 = sphi 0, %s282
      %s297 = sphi 0, %s283
      %s301 = sphi 0, %s301
      %s303 = sphi 0, %s301
      %s304 = sphi 0, %s303
      %s318 = sphi 0, %s304
      %s322 = sphi 0, %s322
      %s324 = sphi 0, %s322
      %s325 = sphi 0, %s324
      %s339 = sphi 0, %s325
      %s343 = sphi 0, %s343
      %s345 = sphi 0, %s343
      %s346 = sphi 0, %s345
      %s360 = sphi 0, %s346
      %s364 = sphi 0, %s364
      %s366 = sphi 0, %s364
      %s367 = sphi 0, %s366
      %s381 = sphi 0, %s367
      %s385 = sphi 0, %s385
      %s387 = sphi 0, %s385
      %s388 = sphi 0, %s387
      %s402 = sphi 0, %s388
      %s406 = sphi 0, %s406
      %s408 = sphi 0, %s406
      %s409 = sphi 0, %s408
      %s423 = sphi 0, %s409
      %s427 = sphi 0, %s427
      %s429 = sphi 0, %s427
      %s430 = sphi 0, %s429
      %s444 = sphi 0, %s430
      %s448 = sphi 0, %s448
      %s450 = sphi 0, %s448
      %s451 = sphi 0, %s450
      %s465 = sphi 0, %s451
    $region4: #{tpu_custom_call.1} parent=1 // loop_header_branch
      %29 = sbr.rel (%p27) target = $region8
    $region5: #{tpu_custom_call.1} parent=1 // loop_body
      %s31 = ssub.s32 %s26, 1
      %s32 = ssub.s32 %s26, 2
      %s33 = sadd.s32 %s26, 1
      %s34 = ssub.s32 %s26, %s33
      %p35 = scmp.eq.s32.totalorder %s34, 0
      %s37 = sadd.s32 %s36, 1
      %s38 = scalar_select %p35, %s36, %s37
      %p41 = pneg %p35
      %p42 = scmp.eq.s32.totalorder %s26, 3
      %p43 = por %p41, %p42
      %p44 = scmp.ne.s32.totalorder %s36, %s39
      %p45 = scmp.eq.s32.totalorder %s26, 0
      %p46 = por %p44, %p45
      %p47 = scmp.ne.s32.totalorder %s36, %s39
      %p48 = scmp.eq.s32.totalorder %s31, 3
      %p49 = por %p47, %p48
      %p50 = scmp.ne.s32.totalorder %s39, %s40
      %p51 = scmp.eq.s32.totalorder %s31, 0
      %p52 = por %p50, %p51
      %p53 = scmp.ne.s32.totalorder %s39, %s40
      %p54 = scmp.eq.s32.totalorder %s32, 3
      %p55 = por %p53, %p54
      %p57 = scmp.ne.s32.totalorder %s40, %s56
      %p58 = scmp.eq.s32.totalorder %s32, 0
      %p59 = por %p57, %p58
      %s60 = ssub.s32 %s26, %s33
      %p61 = scmp.eq.s32.totalorder %s60, 0
      %s63 = sadd.s32 %s62, 1
      %s64 = scalar_select %p61, %s62, %s63
      %p67 = pneg %p61
      %p68 = scmp.eq.s32.totalorder %s26, 3
      %p69 = por %p67, %p68
      %p70 = scmp.ne.s32.totalorder %s62, %s65
      %p71 = scmp.eq.s32.totalorder %s26, 0
      %p72 = por %p70, %p71
      %p73 = scmp.ne.s32.totalorder %s62, %s65
      %p74 = scmp.eq.s32.totalorder %s31, 3
      %p75 = por %p73, %p74
      %p76 = scmp.ne.s32.totalorder %s65, %s66
      %p77 = scmp.eq.s32.totalorder %s31, 0
      %p78 = por %p76, %p77
      %p79 = scmp.ne.s32.totalorder %s65, %s66
      %p80 = scmp.eq.s32.totalorder %s32, 3
      %p81 = por %p79, %p80
      %p83 = scmp.ne.s32.totalorder %s66, %s82
      %p84 = scmp.eq.s32.totalorder %s32, 0
      %p85 = por %p83, %p84
      %s87 = sadd.s32 %s86, 1
      %p90 = scmp.eq.s32.totalorder %s26, 3
      %p91 = scmp.ne.s32.totalorder %s86, %s88
      %p92 = scmp.eq.s32.totalorder %s26, 0
      %p93 = por %p91, %p92
      %p94 = scmp.ne.s32.totalorder %s86, %s88
      %p95 = scmp.eq.s32.totalorder %s31, 3
      %p96 = por %p94, %p95
      %p97 = scmp.ne.s32.totalorder %s88, %s89
      %p98 = scmp.eq.s32.totalorder %s31, 0
      %p99 = por %p97, %p98
      %p100 = scmp.ne.s32.totalorder %s88, %s89
      %p101 = scmp.eq.s32.totalorder %s32, 3
      %p102 = por %p100, %p101
      %p104 = scmp.ne.s32.totalorder %s89, %s103
      %p105 = scmp.eq.s32.totalorder %s32, 0
      %p106 = por %p104, %p105
      %s107 = ssub.s32 %s26, %s33
      %p108 = scmp.eq.s32.totalorder %s107, 0
      %s110 = sadd.s32 %s109, 1
      %s111 = scalar_select %p108, %s109, %s110
      %p114 = pneg %p108
      %p115 = scmp.eq.s32.totalorder %s26, 3
      %p116 = por %p114, %p115
      %p117 = scmp.ne.s32.totalorder %s109, %s112
      %p118 = scmp.eq.s32.totalorder %s26, 0
      %p119 = por %p117, %p118
      %p120 = scmp.ne.s32.totalorder %s109, %s112
      %p121 = scmp.eq.s32.totalorder %s31, 3
      %p122 = por %p120, %p121
      %p123 = scmp.ne.s32.totalorder %s112, %s113
      %p124 = scmp.eq.s32.totalorder %s31, 0
      %p125 = por %p123, %p124
      %p126 = scmp.ne.s32.totalorder %s112, %s113
      %p127 = scmp.eq.s32.totalorder %s32, 3
      %p128 = por %p126, %p127
      %p130 = scmp.ne.s32.totalorder %s113, %s129
      %p131 = scmp.eq.s32.totalorder %s32, 0
      %p132 = por %p130, %p131
      %s134 = sadd.s32 %s133, 1
      %p137 = scmp.eq.s32.totalorder %s26, 3
      %p138 = scmp.ne.s32.totalorder %s133, %s135
      %p139 = scmp.eq.s32.totalorder %s26, 0
      %p140 = por %p138, %p139
      %p141 = scmp.ne.s32.totalorder %s133, %s135
      %p142 = scmp.eq.s32.totalorder %s31, 3
      %p143 = por %p141, %p142
      %p144 = scmp.ne.s32.totalorder %s135, %s136
      %p145 = scmp.eq.s32.totalorder %s31, 0
      %p146 = por %p144, %p145
      %p147 = scmp.ne.s32.totalorder %s135, %s136
      %p148 = scmp.eq.s32.totalorder %s32, 3
      %p149 = por %p147, %p148
      %p151 = scmp.ne.s32.totalorder %s136, %s150
      %p152 = scmp.eq.s32.totalorder %s32, 0
      %p153 = por %p151, %p152
      %s155 = sadd.s32 %s154, 1
      %p158 = scmp.eq.s32.totalorder %s26, 3
      %p159 = scmp.ne.s32.totalorder %s154, %s156
      %p160 = scmp.eq.s32.totalorder %s26, 0
      %p161 = por %p159, %p160
      %p162 = scmp.ne.s32.totalorder %s154, %s156
      %p163 = scmp.eq.s32.totalorder %s31, 3
      %p164 = por %p162, %p163
      %p165 = scmp.ne.s32.totalorder %s156, %s157
      %p166 = scmp.eq.s32.totalorder %s31, 0
      %p167 = por %p165, %p166
      %p168 = scmp.ne.s32.totalorder %s156, %s157
      %p169 = scmp.eq.s32.totalorder %s32, 3
      %p170 = por %p168, %p169
      %p172 = scmp.ne.s32.totalorder %s157, %s171
      %p173 = scmp.eq.s32.totalorder %s32, 0
      %p174 = por %p172, %p173
      %s176 = sadd.s32 %s175, 1
      %p179 = scmp.eq.s32.totalorder %s26, 3
      %p180 = scmp.ne.s32.totalorder %s175, %s177
      %p181 = scmp.eq.s32.totalorder %s26, 0
      %p182 = por %p180, %p181
      %p183 = scmp.ne.s32.totalorder %s175, %s177
      %p184 = scmp.eq.s32.totalorder %s31, 3
      %p185 = por %p183, %p184
      %p186 = scmp.ne.s32.totalorder %s177, %s178
      %p187 = scmp.eq.s32.totalorder %s31, 0
      %p188 = por %p186, %p187
      %p189 = scmp.ne.s32.totalorder %s177, %s178
      %p190 = scmp.eq.s32.totalorder %s32, 3
      %p191 = por %p189, %p190
      %p193 = scmp.ne.s32.totalorder %s178, %s192
      %p194 = scmp.eq.s32.totalorder %s32, 0
      %p195 = por %p193, %p194
      %s197 = sadd.s32 %s196, 1
      %p200 = scmp.eq.s32.totalorder %s26, 3
      %p201 = scmp.ne.s32.totalorder %s196, %s198
      %p202 = scmp.eq.s32.totalorder %s26, 0
      %p203 = por %p201, %p202
      %p204 = scmp.ne.s32.totalorder %s196, %s198
      %p205 = scmp.eq.s32.totalorder %s31, 3
      %p206 = por %p204, %p205
      %p207 = scmp.ne.s32.totalorder %s198, %s199
      %p208 = scmp.eq.s32.totalorder %s31, 0
      %p209 = por %p207, %p208
      %p210 = scmp.ne.s32.totalorder %s198, %s199
      %p211 = scmp.eq.s32.totalorder %s32, 3
      %p212 = por %p210, %p211
      %p214 = scmp.ne.s32.totalorder %s199, %s213
      %p215 = scmp.eq.s32.totalorder %s32, 0
      %p216 = por %p214, %p215
      %s218 = sadd.s32 %s217, 1
      %p221 = scmp.eq.s32.totalorder %s26, 3
      %p222 = scmp.ne.s32.totalorder %s217, %s219
      %p223 = scmp.eq.s32.totalorder %s26, 0
      %p224 = por %p222, %p223
      %p225 = scmp.ne.s32.totalorder %s217, %s219
      %p226 = scmp.eq.s32.totalorder %s31, 3
      %p227 = por %p225, %p226
      %p228 = scmp.ne.s32.totalorder %s219, %s220
      %p229 = scmp.eq.s32.totalorder %s31, 0
      %p230 = por %p228, %p229
      %p231 = scmp.ne.s32.totalorder %s219, %s220
      %p232 = scmp.eq.s32.totalorder %s32, 3
      %p233 = por %p231, %p232
      %p235 = scmp.ne.s32.totalorder %s220, %s234
      %p236 = scmp.eq.s32.totalorder %s32, 0
      %p237 = por %p235, %p236
      %s239 = sadd.s32 %s238, 1
      %p242 = scmp.eq.s32.totalorder %s26, 3
      %p243 = scmp.ne.s32.totalorder %s238, %s240
      %p244 = scmp.eq.s32.totalorder %s26, 0
      %p245 = por %p243, %p244
      %p246 = scmp.ne.s32.totalorder %s238, %s240
      %p247 = scmp.eq.s32.totalorder %s31, 3
      %p248 = por %p246, %p247
      %p249 = scmp.ne.s32.totalorder %s240, %s241
      %p250 = scmp.eq.s32.totalorder %s31, 0
      %p251 = por %p249, %p250
      %p252 = scmp.ne.s32.totalorder %s240, %s241
      %p253 = scmp.eq.s32.totalorder %s32, 3
      %p254 = por %p252, %p253
      %p256 = scmp.ne.s32.totalorder %s241, %s255
      %p257 = scmp.eq.s32.totalorder %s32, 0
      %p258 = por %p256, %p257
      %s260 = sadd.s32 %s259, 1
      %p263 = scmp.eq.s32.totalorder %s26, 3
      %p264 = scmp.ne.s32.totalorder %s259, %s261
      %p265 = scmp.eq.s32.totalorder %s26, 0
      %p266 = por %p264, %p265
      %p267 = scmp.ne.s32.totalorder %s259, %s261
      %p268 = scmp.eq.s32.totalorder %s31, 3
      %p269 = por %p267, %p268
      %p270 = scmp.ne.s32.totalorder %s261, %s262
      %p271 = scmp.eq.s32.totalorder %s31, 0
      %p272 = por %p270, %p271
      %p273 = scmp.ne.s32.totalorder %s261, %s262
      %p274 = scmp.eq.s32.totalorder %s32, 3
      %p275 = por %p273, %p274
      %p277 = scmp.ne.s32.totalorder %s262, %s276
      %p278 = scmp.eq.s32.totalorder %s32, 0
      %p279 = por %p277, %p278
      %s281 = sadd.s32 %s280, 1
      %p284 = scmp.eq.s32.totalorder %s26, 3
      %p285 = scmp.ne.s32.totalorder %s280, %s282
      %p286 = scmp.eq.s32.totalorder %s26, 0
      %p287 = por %p285, %p286
      %p288 = scmp.ne.s32.totalorder %s280, %s282
      %p289 = scmp.eq.s32.totalorder %s31, 3
      %p290 = por %p288, %p289
      %p291 = scmp.ne.s32.totalorder %s282, %s283
      %p292 = scmp.eq.s32.totalorder %s31, 0
      %p293 = por %p291, %p292
      %p294 = scmp.ne.s32.totalorder %s282, %s283
      %p295 = scmp.eq.s32.totalorder %s32, 3
      %p296 = por %p294, %p295
      %p298 = scmp.ne.s32.totalorder %s283, %s297
      %p299 = scmp.eq.s32.totalorder %s32, 0
      %p300 = por %p298, %p299
      %s302 = sadd.s32 %s301, 1
      %p305 = scmp.eq.s32.totalorder %s26, 3
      %p306 = scmp.ne.s32.totalorder %s301, %s303
      %p307 = scmp.eq.s32.totalorder %s26, 0
      %p308 = por %p306, %p307
      %p309 = scmp.ne.s32.totalorder %s301, %s303
      %p310 = scmp.eq.s32.totalorder %s31, 3
      %p311 = por %p309, %p310
      %p312 = scmp.ne.s32.totalorder %s303, %s304
      %p313 = scmp.eq.s32.totalorder %s31, 0
      %p314 = por %p312, %p313
      %p315 = scmp.ne.s32.totalorder %s303, %s304
      %p316 = scmp.eq.s32.totalorder %s32, 3
      %p317 = por %p315, %p316
      %p319 = scmp.ne.s32.totalorder %s304, %s318
      %p320 = scmp.eq.s32.totalorder %s32, 0
      %p321 = por %p319, %p320
      %s323 = sadd.s32 %s322, 1
      %p326 = scmp.eq.s32.totalorder %s26, 3
      %p327 = scmp.ne.s32.totalorder %s322, %s324
      %p328 = scmp.eq.s32.totalorder %s26, 0
      %p329 = por %p327, %p328
      %p330 = scmp.ne.s32.totalorder %s322, %s324
      %p331 = scmp.eq.s32.totalorder %s31, 3
      %p332 = por %p330, %p331
      %p333 = scmp.ne.s32.totalorder %s324, %s325
      %p334 = scmp.eq.s32.totalorder %s31, 0
      %p335 = por %p333, %p334
      %p336 = scmp.ne.s32.totalorder %s324, %s325
      %p337 = scmp.eq.s32.totalorder %s32, 3
      %p338 = por %p336, %p337
      %p340 = scmp.ne.s32.totalorder %s325, %s339
      %p341 = scmp.eq.s32.totalorder %s32, 0
      %p342 = por %p340, %p341
      %s344 = sadd.s32 %s343, 1
      %p347 = scmp.eq.s32.totalorder %s26, 3
      %p348 = scmp.ne.s32.totalorder %s343, %s345
      %p349 = scmp.eq.s32.totalorder %s26, 0
      %p350 = por %p348, %p349
      %p351 = scmp.ne.s32.totalorder %s343, %s345
      %p352 = scmp.eq.s32.totalorder %s31, 3
      %p353 = por %p351, %p352
      %p354 = scmp.ne.s32.totalorder %s345, %s346
      %p355 = scmp.eq.s32.totalorder %s31, 0
      %p356 = por %p354, %p355
      %p357 = scmp.ne.s32.totalorder %s345, %s346
      %p358 = scmp.eq.s32.totalorder %s32, 3
      %p359 = por %p357, %p358
      %p361 = scmp.ne.s32.totalorder %s346, %s360
      %p362 = scmp.eq.s32.totalorder %s32, 0
      %p363 = por %p361, %p362
      %s365 = sadd.s32 %s364, 1
      %p368 = scmp.eq.s32.totalorder %s26, 3
      %p369 = scmp.ne.s32.totalorder %s364, %s366
      %p370 = scmp.eq.s32.totalorder %s26, 0
      %p371 = por %p369, %p370
      %p372 = scmp.ne.s32.totalorder %s364, %s366
      %p373 = scmp.eq.s32.totalorder %s31, 3
      %p374 = por %p372, %p373
      %p375 = scmp.ne.s32.totalorder %s366, %s367
      %p376 = scmp.eq.s32.totalorder %s31, 0
      %p377 = por %p375, %p376
      %p378 = scmp.ne.s32.totalorder %s366, %s367
      %p379 = scmp.eq.s32.totalorder %s32, 3
      %p380 = por %p378, %p379
      %p382 = scmp.ne.s32.totalorder %s367, %s381
      %p383 = scmp.eq.s32.totalorder %s32, 0
      %p384 = por %p382, %p383
      %s386 = sadd.s32 %s385, 1
      %p389 = scmp.eq.s32.totalorder %s26, 3
      %p390 = scmp.ne.s32.totalorder %s385, %s387
      %p391 = scmp.eq.s32.totalorder %s26, 0
      %p392 = por %p390, %p391
      %p393 = scmp.ne.s32.totalorder %s385, %s387
      %p394 = scmp.eq.s32.totalorder %s31, 3
      %p395 = por %p393, %p394
      %p396 = scmp.ne.s32.totalorder %s387, %s388
      %p397 = scmp.eq.s32.totalorder %s31, 0
      %p398 = por %p396, %p397
      %p399 = scmp.ne.s32.totalorder %s387, %s388
      %p400 = scmp.eq.s32.totalorder %s32, 3
      %p401 = por %p399, %p400
      %p403 = scmp.ne.s32.totalorder %s388, %s402
      %p404 = scmp.eq.s32.totalorder %s32, 0
      %p405 = por %p403, %p404
      %s407 = sadd.s32 %s406, 1
      %p410 = scmp.eq.s32.totalorder %s26, 3
      %p411 = scmp.ne.s32.totalorder %s406, %s408
      %p412 = scmp.eq.s32.totalorder %s26, 0
      %p413 = por %p411, %p412
      %p414 = scmp.ne.s32.totalorder %s406, %s408
      %p415 = scmp.eq.s32.totalorder %s31, 3
      %p416 = por %p414, %p415
      %p417 = scmp.ne.s32.totalorder %s408, %s409
      %p418 = scmp.eq.s32.totalorder %s31, 0
      %p419 = por %p417, %p418
      %p420 = scmp.ne.s32.totalorder %s408, %s409
      %p421 = scmp.eq.s32.totalorder %s32, 3
      %p422 = por %p420, %p421
      %p424 = scmp.ne.s32.totalorder %s409, %s423
      %p425 = scmp.eq.s32.totalorder %s32, 0
      %p426 = por %p424, %p425
      %s428 = sadd.s32 %s427, 1
      %p431 = scmp.eq.s32.totalorder %s26, 3
      %p432 = scmp.ne.s32.totalorder %s427, %s429
      %p433 = scmp.eq.s32.totalorder %s26, 0
      %p434 = por %p432, %p433
      %p435 = scmp.ne.s32.totalorder %s427, %s429
      %p436 = scmp.eq.s32.totalorder %s31, 3
      %p437 = por %p435, %p436
      %p438 = scmp.ne.s32.totalorder %s429, %s430
      %p439 = scmp.eq.s32.totalorder %s31, 0
      %p440 = por %p438, %p439
      %p441 = scmp.ne.s32.totalorder %s429, %s430
      %p442 = scmp.eq.s32.totalorder %s32, 3
      %p443 = por %p441, %p442
      %p445 = scmp.ne.s32.totalorder %s430, %s444
      %p446 = scmp.eq.s32.totalorder %s32, 0
      %p447 = por %p445, %p446
      %s449 = sadd.s32 %s448, 1
      %p452 = scmp.eq.s32.totalorder %s26, 3
      %p453 = scmp.ne.s32.totalorder %s448, %s450
      %p454 = scmp.eq.s32.totalorder %s26, 0
      %p455 = por %p453, %p454
      %p456 = scmp.ne.s32.totalorder %s448, %s450
      %p457 = scmp.eq.s32.totalorder %s31, 3
      %p458 = por %p456, %p457
      %p459 = scmp.ne.s32.totalorder %s450, %s451
      %p460 = scmp.eq.s32.totalorder %s31, 0
      %p461 = por %p459, %p460
      %p462 = scmp.ne.s32.totalorder %s450, %s451
      %p463 = scmp.eq.s32.totalorder %s32, 3
      %p464 = por %p462, %p463
      %p466 = scmp.ne.s32.totalorder %s451, %s465
      %p467 = scmp.eq.s32.totalorder %s32, 0
      %p468 = por %p466, %p467
      %p469 = scmp.le.s32.totalorder 1, %s26
      %p470 = scmp.lt.s32.totalorder %s26, 5
      %p471 = pnand %p469, %p470
      %p472 = pneg %p471
      // Predicated region
      $region9: #{tpu_custom_call.1} parent=5 // pred_check
        _
      $region10: #{tpu_custom_call.1} parent=5 // pred_check_branch
        %474 = sbr.rel (%p471) target = $region12
      $region11: #{tpu_custom_call.1} parent=5 // pred_region
        %s475 = ssub.s32 %s26, 1
        // Predicated region
        $region13: #{tpu_custom_call.1} parent=11 // pred_check
          %p476 = pneg %p99
        $region14: #{tpu_custom_call.1} parent=11 // pred_check_branch
          %478 = sbr.rel (%p476) target = $region16
        $region15: #{tpu_custom_call.1} parent=11 // pred_region
          _
        $region16: #{tpu_custom_call.1} parent=11 // pred_fallthru
          _
        // Predicated region
        $region17: #{tpu_custom_call.1} parent=11 // pred_check
          %p479 = pneg %p146
        $region18: #{tpu_custom_call.1} parent=11 // pred_check_branch
          %481 = sbr.rel (%p479) target = $region20
        $region19: #{tpu_custom_call.1} parent=11 // pred_region
          _
        $region20: #{tpu_custom_call.1} parent=11 // pred_fallthru
          _
        // Predicated region
        $region21: #{tpu_custom_call.1} parent=11 // pred_check
          %p482 = pneg %p167
        $region22: #{tpu_custom_call.1} parent=11 // pred_check_branch
          %484 = sbr.rel (%p482) target = $region24
        $region23: #{tpu_custom_call.1} parent=11 // pred_region
          _
        $region24: #{tpu_custom_call.1} parent=11 // pred_fallthru
          _
        // Predicated region
        $region25: #{tpu_custom_call.1} parent=11 // pred_check
          %p485 = pneg %p188
        $region26: #{tpu_custom_call.1} parent=11 // pred_check_branch
          %487 = sbr.rel (%p485) target = $region28
        $region27: #{tpu_custom_call.1} parent=11 // pred_region
          _
        $region28: #{tpu_custom_call.1} parent=11 // pred_fallthru
          _
        // Predicated region
        $region29: #{tpu_custom_call.1} parent=11 // pred_check
          %p488 = pneg %p209
        $region30: #{tpu_custom_call.1} parent=11 // pred_check_branch
          %490 = sbr.rel (%p488) target = $region32
        $region31: #{tpu_custom_call.1} parent=11 // pred_region
          _
        $region32: #{tpu_custom_call.1} parent=11 // pred_fallthru
          _
        // Predicated region
        $region33: #{tpu_custom_call.1} parent=11 // pred_check
          %p491 = pneg %p230
        $region34: #{tpu_custom_call.1} parent=11 // pred_check_branch
          %493 = sbr.rel (%p491) target = $region36
        $region35: #{tpu_custom_call.1} parent=11 // pred_region
          _
        $region36: #{tpu_custom_call.1} parent=11 // pred_fallthru
          _
        // Predicated region
        $region37: #{tpu_custom_call.1} parent=11 // pred_check
          %p494 = pneg %p251
        $region38: #{tpu_custom_call.1} parent=11 // pred_check_branch
          %496 = sbr.rel (%p494) target = $region40
        $region39: #{tpu_custom_call.1} parent=11 // pred_region
          _
        $region40: #{tpu_custom_call.1} parent=11 // pred_fallthru
          _
        // Predicated region
        $region41: #{tpu_custom_call.1} parent=11 // pred_check
          %p497 = pneg %p272
        $region42: #{tpu_custom_call.1} parent=11 // pred_check_branch
          %499 = sbr.rel (%p497) target = $region44
        $region43: #{tpu_custom_call.1} parent=11 // pred_region
          _
        $region44: #{tpu_custom_call.1} parent=11 // pred_fallthru
          _
        // Predicated region
        $region45: #{tpu_custom_call.1} parent=11 // pred_check
          %p500 = pneg %p293
        $region46: #{tpu_custom_call.1} parent=11 // pred_check_branch
          %502 = sbr.rel (%p500) target = $region48
        $region47: #{tpu_custom_call.1} parent=11 // pred_region
          _
        $region48: #{tpu_custom_call.1} parent=11 // pred_fallthru
          _
        // Predicated region
        $region49: #{tpu_custom_call.1} parent=11 // pred_check
          %p503 = pneg %p314
        $region50: #{tpu_custom_call.1} parent=11 // pred_check_branch
          %505 = sbr.rel (%p503) target = $region52
        $region51: #{tpu_custom_call.1} parent=11 // pred_region
          _
        $region52: #{tpu_custom_call.1} parent=11 // pred_fallthru
          _
        // Predicated region
        $region53: #{tpu_custom_call.1} parent=11 // pred_check
          %p506 = pneg %p335
        $region54: #{tpu_custom_call.1} parent=11 // pred_check_branch
          %508 = sbr.rel (%p506) target = $region56
        $region55: #{tpu_custom_call.1} parent=11 // pred_region
          _
        $region56: #{tpu_custom_call.1} parent=11 // pred_fallthru
          _
        // Predicated region
        $region57: #{tpu_custom_call.1} parent=11 // pred_check
          %p509 = pneg %p356
        $region58: #{tpu_custom_call.1} parent=11 // pred_check_branch
          %511 = sbr.rel (%p509) target = $region60
        $region59: #{tpu_custom_call.1} parent=11 // pred_region
          _
        $region60: #{tpu_custom_call.1} parent=11 // pred_fallthru
          _
        // Predicated region
        $region61: #{tpu_custom_call.1} parent=11 // pred_check
          %p512 = pneg %p377
        $region62: #{tpu_custom_call.1} parent=11 // pred_check_branch
          %514 = sbr.rel (%p512) target = $region64
        $region63: #{tpu_custom_call.1} parent=11 // pred_region
          _
        $region64: #{tpu_custom_call.1} parent=11 // pred_fallthru
          _
        // Predicated region
        $region65: #{tpu_custom_call.1} parent=11 // pred_check
          %p515 = pneg %p398
        $region66: #{tpu_custom_call.1} parent=11 // pred_check_branch
          %517 = sbr.rel (%p515) target = $region68
        $region67: #{tpu_custom_call.1} parent=11 // pred_region
          _
        $region68: #{tpu_custom_call.1} parent=11 // pred_fallthru
          _
        // Predicated region
        $region69: #{tpu_custom_call.1} parent=11 // pred_check
          %p518 = pneg %p419
        $region70: #{tpu_custom_call.1} parent=11 // pred_check_branch
          %520 = sbr.rel (%p518) target = $region72
        $region71: #{tpu_custom_call.1} parent=11 // pred_region
          _
        $region72: #{tpu_custom_call.1} parent=11 // pred_fallthru
          _
        // Predicated region
        $region73: #{tpu_custom_call.1} parent=11 // pred_check
          %p521 = pneg %p440
        $region74: #{tpu_custom_call.1} parent=11 // pred_check_branch
          %523 = sbr.rel (%p521) target = $region76
        $region75: #{tpu_custom_call.1} parent=11 // pred_region
          _
        $region76: #{tpu_custom_call.1} parent=11 // pred_fallthru
          _
      $region12: #{tpu_custom_call.1} parent=5 // pred_fallthru
        _
      %p524 = scmp.lt.s32.totalorder %s26, 4
      // Predicated region
      $region77: #{tpu_custom_call.1} parent=5 // pred_check
        %p525 = pneg %p524
      $region78: #{tpu_custom_call.1} parent=5 // pred_check_branch
        %527 = sbr.rel (%p525) target = $region80
      $region79: #{tpu_custom_call.1} parent=5 // pred_region
        // Predicated region
        $region81: #{tpu_custom_call.1} parent=79 // pred_check
          %p528 = pneg %p46
        $region82: #{tpu_custom_call.1} parent=79 // pred_check_branch
          %530 = sbr.rel (%p528) target = $region84
        $region83: #{tpu_custom_call.1} parent=79 // pred_region
          %s531 = smul.u32 2, %s26
          %p532 = scmp.lt.s32.totalorder %s531, 7
          %s533 = scalar_select %p532, %s531, 7
          %s534 = smul.addr %s533, 8
          %s535 = scalar_lea.vmem %s0, %s534
          %s536 = smul.u32 2, %s26
        $region84: #{tpu_custom_call.1} parent=79 // pred_fallthru
          _
        // Predicated region
        $region85: #{tpu_custom_call.1} parent=79 // pred_check
          %p537 = pneg %p72
        $region86: #{tpu_custom_call.1} parent=79 // pred_check_branch
          %539 = sbr.rel (%p537) target = $region88
        $region87: #{tpu_custom_call.1} parent=79 // pred_region
          %s540 = smul.u32 2, %s26
          %p541 = scmp.lt.s32.totalorder %s540, 7
          %s542 = scalar_select %p541, %s540, 7
          %s543 = smul.addr %s542, 8
          %s544 = scalar_lea.vmem %s1, %s543
          %s545 = smul.u32 2, %s26
        $region88: #{tpu_custom_call.1} parent=79 // pred_fallthru
          _
        // Predicated region
        $region89: #{tpu_custom_call.1} parent=79 // pred_check
          %p546 = pneg %p119
        $region90: #{tpu_custom_call.1} parent=79 // pred_check_branch
          %548 = sbr.rel (%p546) target = $region92
        $region91: #{tpu_custom_call.1} parent=79 // pred_region
          %s549 = smul.u32 2, %s26
          %p550 = scmp.lt.s32.totalorder %s549, 7
          %s551 = scalar_select %p550, %s549, 7
          %s552 = smul.addr %s551, 8
          %s553 = scalar_lea.vmem %s3, %s552
          %s554 = smul.u32 2, %s26
        $region92: #{tpu_custom_call.1} parent=79 // pred_fallthru
          _
      $region80: #{tpu_custom_call.1} parent=5 // pred_fallthru
        _
      %p555 = scmp.le.s32.totalorder 1, %s26
      %p556 = scmp.lt.s32.totalorder %s26, 5
      %p557 = pnand %p555, %p556
      %p558 = pneg %p557
      // Predicated region
      $region93: #{tpu_custom_call.1} parent=5 // pred_check
        _
      $region94: #{tpu_custom_call.1} parent=5 // pred_check_branch
        %560 = sbr.rel (%p557) target = $region96
      $region95: #{tpu_custom_call.1} parent=5 // pred_region
        %s561 = ssub.s32 %s26, 1
        %s562 = smul.u32 2, %s31
        %p563 = scmp.lt.s32.totalorder %s562, 7
        %s564 = scalar_select %p563, %s562, 7
        %s565 = smul.addr %s564, 8
        %s566 = scalar_lea.vmem %s0, %s565
        %p567 = pneg %p52
        %p568 = pneg %p49
        %s569 = smul.u32 2, %s31
        %p570 = scmp.lt.s32.totalorder %s569, 7
        %s571 = scalar_select %p570, %s569, 7
        %s572 = smul.addr %s571, 8
        %s573 = scalar_lea.vmem %s1, %s572
        %p574 = pneg %p78
        %p575 = pneg %p75
        %p576 = pneg %p99
        %p577 = pneg %p96
        %s578 = smul.u32 2, %s31
        %p579 = scmp.lt.s32.totalorder %s578, 7
        %s580 = scalar_select %p579, %s578, 7
        %s581 = smul.addr %s580, 8
        %s582 = scalar_lea.vmem %s3, %s581
        %p583 = pneg %p125
        %p584 = pneg %p122
        %p585 = pneg %p146
        %p586 = pneg %p143
        %p587 = pneg %p167
        %p588 = pneg %p164
        %p589 = pneg %p188
        %p590 = pneg %p185
        %p591 = pneg %p209
        %p592 = pneg %p206
        %p593 = pneg %p230
        %p594 = pneg %p227
        %p595 = pneg %p251
        %p596 = pneg %p248
        %p597 = pneg %p272
        %p598 = pneg %p269
        %p599 = pneg %p293
        %p600 = pneg %p290
        %p601 = pneg %p314
        %p602 = pneg %p311
        %p603 = pneg %p335
        %p604 = pneg %p332
        %p605 = pneg %p356
        %p606 = pneg %p353
        %p607 = pneg %p377
        %p608 = pneg %p374
        %p609 = pneg %p398
        %p610 = pneg %p395
        %p611 = pneg %p419
        %p612 = pneg %p416
        %p613 = pneg %p440
        %p614 = pneg %p437
        %p615 = pneg %p461
        %p616 = pneg %p458
        %s617 = smul.u32 2, %s31
        %p618 = scmp.lt.s32.totalorder %s617, 7
        %s619 = scalar_select %p618, %s617, 7
        %s620 = smul.addr %s619, 8
        %s621 = scalar_lea.vmem %s0, %s620
        %s622 = smul.u32 2, %s31
        %s623 = smul.u32 2, %s31
        %p624 = scmp.lt.s32.totalorder %s623, 7
        %s625 = scalar_select %p624, %s623, 7
        %s626 = smul.addr %s625, 8
        %s627 = scalar_lea.vmem %s1, %s626
        %s628 = smul.u32 2, %s31
        %s629 = smul.u32 2, %s31
        %p630 = scmp.lt.s32.totalorder %s629, 7
        %s631 = scalar_select %p630, %s629, 7
        %s632 = smul.addr %s631, 8
        %s633 = scalar_lea.vmem %s3, %s632
        %s634 = smul.u32 2, %s31
        %p635 = scmp.eq.s32.totalorder %s31, 0
        // Predicated region
        $region97: #{tpu_custom_call.1} parent=95 // pred_check
          %p636 = pneg %p635
        $region98: #{tpu_custom_call.1} parent=95 // pred_check_branch
          %638 = sbr.rel (%p636) target = $region100
        $region99: #{tpu_custom_call.1} parent=95 // pred_region
          %v639 = vld [vmem:[%s2] sm:$0xff]
          %v640 = vld [vmem:[%s2 + $0x8] sm:$0xff]
          %v641 = vld [vmem:[%s4] sm:$0xff]
          %v642 = vld [vmem:[%s4 + $0x8] sm:$0xff]
          %v643 = vld [vmem:[%s4 + $0x10] sm:$0xff]
          %v644 = vld [vmem:[%s4 + $0x18] sm:$0xff]
          %vm645 = vcmask 261120
          %v647 = vsel %vm645, %v639, 0
          %v650 = vsel %vm645, %v640, 0
          %652 = vmatpush.msra.mxu0 0.0
          %653 = vmatpush.msra.mxu0 0.0
          %654 = vmatpush.msra.mxu0 0.0
          %655 = vmatpush.msra.mxu0 0.0
          %656 = vmatpush.msra.mxu0 0.0
          %657 = vmatpush.msra.mxu0 0.0
          %658 = vmatpush.msra.mxu0 0.0
          %659 = vmatpush.msra.mxu0 0.0
          %660 = vmatpush.msra.mxu0 0.0
          %661 = vmatpush.msra.mxu0 0.0
          %662 = vmatpush.msra.mxu0 0.0
          %663 = vmatpush.msra.mxu0 0.0
          %664 = vmatpush.msra.mxu0 %v644
          %665 = vmatpush.msra.mxu0 %v643
          %666 = vmatpush.msra.mxu0 %v642
          %667 = vmatpush.msra.mxu0 %v641
          %668 = vmatmul.f32.gmra.mxu0 %v647
          %v669 = vpop.f32.mrf.mxu0
          %v670 = vadd.f32 0.0, %v669
          %671 = vmatmul.f32.gmra.mxu0 %v650
          %v672 = vpop.f32.mrf.mxu0
          %v673 = vadd.f32 0.0, %v672
          %674 = vdwg.mxu0
          %675 = vst.msk [vmem:[#allocation2] sm:$0xff] %vm645, %v670
          %676 = vst.msk [vmem:[#allocation2 + $0x8] sm:$0xff] %vm645, %v673
          %v677 = vld [vmem:[%s5] sm:$0xff]
          %v678 = vld [vmem:[%s5 + $0x8] sm:$0xff]
          %v679 = vld [vmem:[%s5 + $0x10] sm:$0xff]
          %v680 = vld [vmem:[%s5 + $0x18] sm:$0xff]
          %681 = vmatpush.msra.mxu0 0.0
          %682 = vmatpush.msra.mxu0 0.0
          %683 = vmatpush.msra.mxu0 0.0
          %684 = vmatpush.msra.mxu0 0.0
          %685 = vmatpush.msra.mxu0 0.0
          %686 = vmatpush.msra.mxu0 0.0
          %687 = vmatpush.msra.mxu0 0.0
          %688 = vmatpush.msra.mxu0 0.0
          %689 = vmatpush.msra.mxu0 0.0
          %690 = vmatpush.msra.mxu0 0.0
          %691 = vmatpush.msra.mxu0 0.0
          %692 = vmatpush.msra.mxu0 0.0
          %693 = vmatpush.msra.mxu0 %v680
          %694 = vmatpush.msra.mxu0 %v679
          %695 = vmatpush.msra.mxu0 %v678
          %696 = vmatpush.msra.mxu0 %v677
          %697 = vmatmul.f32.gmra.mxu0 %v647
          %v698 = vpop.f32.mrf.mxu0
          %v699 = vadd.f32 0.0, %v698
          %700 = vmatmul.f32.gmra.mxu0 %v650
          %v701 = vpop.f32.mrf.mxu0
          %v702 = vadd.f32 0.0, %v701
          %703 = vdwg.mxu0
          %704 = vst.msk [vmem:[#allocation3] sm:$0xff] %vm645, %v699
          %705 = vst.msk [vmem:[#allocation3 + $0x8] sm:$0xff] %vm645, %v702
          %v706 = vld [vmem:[%s7] sm:$0xff]
          %v707 = vld [vmem:[%s7 + $0x8] sm:$0xff]
          %v708 = vld [vmem:[%s7 + $0x10] sm:$0xff]
          %v709 = vld [vmem:[%s7 + $0x18] sm:$0xff]
          %710 = vmatpush.msra.mxu0 0.0
          %711 = vmatpush.msra.mxu0 0.0
          %712 = vmatpush.msra.mxu0 0.0
          %713 = vmatpush.msra.mxu0 0.0
          %714 = vmatpush.msra.mxu0 0.0
          %715 = vmatpush.msra.mxu0 0.0
          %716 = vmatpush.msra.mxu0 0.0
          %717 = vmatpush.msra.mxu0 0.0
          %718 = vmatpush.msra.mxu0 0.0
          %719 = vmatpush.msra.mxu0 0.0
          %720 = vmatpush.msra.mxu0 0.0
          %721 = vmatpush.msra.mxu0 0.0
          %722 = vmatpush.msra.mxu0 %v709
          %723 = vmatpush.msra.mxu0 %v708
          %724 = vmatpush.msra.mxu0 %v707
          %725 = vmatpush.msra.mxu0 %v706
          %726 = vmatmul.f32.gmra.mxu0 %v647
          %v727 = vpop.f32.mrf.mxu0
          %v728 = vadd.f32 0.0, %v727
          %729 = vmatmul.f32.gmra.mxu0 %v650
          %v730 = vpop.f32.mrf.mxu0
          %v731 = vadd.f32 0.0, %v730
          %732 = vdwg.mxu0
          %733 = vst.msk [vmem:[#allocation4] sm:$0xff] %vm645, %v728
          %734 = vst.msk [vmem:[#allocation4 + $0x8] sm:$0xff] %vm645, %v731
          %735 = vst.msk [vmem:[#allocation5] sm:$0xff] %vm645, 0.0
          %736 = vst.msk [vmem:[#allocation5 + $0x8] sm:$0xff] %vm645, 0.0
          %737 = vst.msk [vmem:[#allocation6] sm:$0xff] %vm645, 0.0
          %738 = vst.msk [vmem:[#allocation6 + $0x8] sm:$0xff] %vm645, 0.0
        $region100: #{tpu_custom_call.1} parent=95 // pred_fallthru
          _
        %v739 = vlaneseq
        %v740 = vand.u32 %v739, 127
        %v741 = vld [vmem:[%s621] sm:$0xff]
        %v742 = vld [vmem:[%s621 + $0x8] sm:$0xff]
        %743 = vset.pattern.permute.xlu0 0
        %744 = vperm.xlu0 %743, %v741
        %v745 = vpop.permute.xlu0 %744
        %746 = vset.pattern.permute.xlu0 0
        %747 = vperm.xlu0 %746, %v742
        %v748 = vpop.permute.xlu0 %747
        %vm749 = vcmp.eq.s32.totalorder %v745, %v740
        %vm750 = vcmp.eq.s32.totalorder %v748, %v740
        %v751 = vsel %vm749, 1, 0
        %v752 = vsel %vm750, 1, 0
        %v753 = vcvt.s32.f32 %v751
        %v754 = vcvt.s32.f32 %v752
        %v755 = vld [vmem:[%s627] sm:$0xff]
        %v756 = vld [vmem:[%s627 + $0x8] sm:$0xff]
        %757 = vset.pattern.permute.xlu0 0
        %758 = vperm.xlu0 %757, %v755
        %v759 = vpop.permute.xlu0 %758
        %760 = vset.pattern.permute.xlu0 0
        %761 = vperm.xlu0 %760, %v756
        %v762 = vpop.permute.xlu0 %761
        %vm763 = vcmp.eq.s32.totalorder %v759, %v740
        %vm764 = vcmp.eq.s32.totalorder %v762, %v740
        %v765 = vsel %vm763, 1, 0
        %v766 = vsel %vm764, 1, 0
        %v767 = vcvt.s32.f32 %v765
        %v768 = vcvt.s32.f32 %v766
        %v769 = vld [vmem:[#allocation3] sm:$0xff]
        %v770 = vld [vmem:[#allocation3 + $0x8] sm:$0xff]
        %vm771 = vcmask 130048
        %v773 = vsel %vm771, %v753, 0
        %v776 = vsel %vm771, %v754, 0
        %778 = vmatpush.msra.mxu0 0.0
        %779 = vmatpush.msra.mxu0 0.0
        %780 = vmatpush.msra.mxu0 0.0
        %781 = vmatpush.msra.mxu0 0.0
        %782 = vmatpush.msra.mxu0 0.0
        %783 = vmatpush.msra.mxu0 0.0
        %784 = vmatpush.msra.mxu0 0.0
        %785 = vmatpush.msra.mxu0 0.0
        %786 = vmatpush.msra.mxu0 0.0
        %787 = vmatpush.msra.mxu0 0.0
        %788 = vmatpush.msra.mxu0 0.0
        %789 = vmatpush.msra.mxu0 0.0
        %790 = vmatpush.msra.mxu0 0.0
        %791 = vmatpush.msra.mxu0 0.0
        %792 = vmatpush.msra.mxu0 %v770
        %793 = vmatpush.msra.mxu0 %v769
        %794 = vmatmul.f32.gmra.mxu0 %v773
        %v795 = vpop.f32.mrf.mxu0
        %v796 = vadd.f32 0.0, %v795
        %797 = vmatmul.f32.gmra.mxu0 %v776
        %v798 = vpop.f32.mrf.mxu0
        %v799 = vadd.f32 0.0, %v798
        %800 = vdwg.mxu0
        %v801 = vld [vmem:[#allocation2] sm:$0xff]
        %v802 = vld [vmem:[#allocation2 + $0x8] sm:$0xff]
        %v804 = vsel %vm771, %v767, 0
        %v807 = vsel %vm771, %v768, 0
        %809 = vmatpush.msra.mxu0 0.0
        %810 = vmatpush.msra.mxu0 0.0
        %811 = vmatpush.msra.mxu0 0.0
        %812 = vmatpush.msra.mxu0 0.0
        %813 = vmatpush.msra.mxu0 0.0
        %814 = vmatpush.msra.mxu0 0.0
        %815 = vmatpush.msra.mxu0 0.0
        %816 = vmatpush.msra.mxu0 0.0
        %817 = vmatpush.msra.mxu0 0.0
        %818 = vmatpush.msra.mxu0 0.0
        %819 = vmatpush.msra.mxu0 0.0
        %820 = vmatpush.msra.mxu0 0.0
        %821 = vmatpush.msra.mxu0 0.0
        %822 = vmatpush.msra.mxu0 0.0
        %823 = vmatpush.msra.mxu0 %v802
        %824 = vmatpush.msra.mxu0 %v801
        %825 = vmatmul.f32.gmra.mxu0 %v804
        %v826 = vpop.f32.mrf.mxu0
        %v827 = vadd.f32 0.0, %v826
        %828 = vmatmul.f32.gmra.mxu0 %v807
        %v829 = vpop.f32.mrf.mxu0
        %v830 = vadd.f32 0.0, %v829
        %831 = vdwg.mxu0
        %v832 = vld [vmem:[#allocation4] sm:$0xff]
        %v833 = vld [vmem:[#allocation4 + $0x8] sm:$0xff]
        %834 = vmatpush.msra.mxu0 0.0
        %835 = vmatpush.msra.mxu0 0.0
        %836 = vmatpush.msra.mxu0 0.0
        %837 = vmatpush.msra.mxu0 0.0
        %838 = vmatpush.msra.mxu0 0.0
        %839 = vmatpush.msra.mxu0 0.0
        %840 = vmatpush.msra.mxu0 0.0
        %841 = vmatpush.msra.mxu0 0.0
        %842 = vmatpush.msra.mxu0 0.0
        %843 = vmatpush.msra.mxu0 0.0
        %844 = vmatpush.msra.mxu0 0.0
        %845 = vmatpush.msra.mxu0 0.0
        %846 = vmatpush.msra.mxu0 0.0
        %847 = vmatpush.msra.mxu0 0.0
        %848 = vmatpush.msra.mxu0 %v833
        %849 = vmatpush.msra.mxu0 %v832
        %850 = vmatmul.f32.gmra.mxu0 %v773
        %v851 = vpop.f32.mrf.mxu0
        %v852 = vadd.f32 0.0, %v851
        %853 = vmatmul.f32.gmra.mxu0 %v776
        %v854 = vpop.f32.mrf.mxu0
        %v855 = vadd.f32 0.0, %v854
        %856 = vdwg.mxu0
        %v857 = vld [vmem:[%s633] sm:$0xff]
        %v858 = vld [vmem:[%s633 + $0x8] sm:$0xff]
        %v859 = vld [vmem:[%s6] sm:$0xff]
        %v860 = vld [vmem:[%s6 + $0x8] sm:$0xff]
        %v861 = vld [vmem:[%s6 + $0x10] sm:$0xff]
        %v862 = vld [vmem:[%s6 + $0x18] sm:$0xff]
        %vm863 = vcmask 261120
        %v865 = vsel %vm863, %v857, 0
        %v868 = vsel %vm863, %v858, 0
        %870 = vmatpush.msra.mxu0 0.0
        %871 = vmatpush.msra.mxu0 0.0
        %872 = vmatpush.msra.mxu0 0.0
        %873 = vmatpush.msra.mxu0 0.0
        %874 = vmatpush.msra.mxu0 0.0
        %875 = vmatpush.msra.mxu0 0.0
        %876 = vmatpush.msra.mxu0 0.0
        %877 = vmatpush.msra.mxu0 0.0
        %878 = vmatpush.msra.mxu0 0.0
        %879 = vmatpush.msra.mxu0 0.0
        %880 = vmatpush.msra.mxu0 0.0
        %881 = vmatpush.msra.mxu0 0.0
        %882 = vmatpush.msra.mxu0 %v862
        %883 = vmatpush.msra.mxu0 %v861
        %884 = vmatpush.msra.mxu0 %v860
        %885 = vmatpush.msra.mxu0 %v859
        %886 = vmatmul.f32.gmra.mxu0 %v865
        %v887 = vpop.f32.mrf.mxu0
        %v888 = vadd.f32 0.0, %v887
        %889 = vmatmul.f32.gmra.mxu0 %v868
        %v890 = vpop.f32.mrf.mxu0
        %v891 = vadd.f32 0.0, %v890
        %892 = vdwg.mxu0
        %v893 = vmul.f32 %v796, %v827
        %v894 = vmul.f32 %v799, %v830
        %v895 = vmul.f32 %v893, %v888
        %v896 = vmul.f32 %v894, %v891
        %v897 = vld [vmem:[%s8] sm:$0xff]
        %v898 = vld [vmem:[%s8 + $0x8] sm:$0xff]
        %v899 = vld [vmem:[%s8 + $0x10] sm:$0xff]
        %v900 = vld [vmem:[%s8 + $0x18] sm:$0xff]
        %v902 = vsel %vm863, %v895, 0
        %v905 = vsel %vm863, %v896, 0
        %907 = vmatpush.msra.mxu0 0.0
        %908 = vmatpush.msra.mxu0 0.0
        %909 = vmatpush.msra.mxu0 0.0
        %910 = vmatpush.msra.mxu0 0.0
        %911 = vmatpush.msra.mxu0 0.0
        %912 = vmatpush.msra.mxu0 0.0
        %913 = vmatpush.msra.mxu0 0.0
        %914 = vmatpush.msra.mxu0 0.0
        %915 = vmatpush.msra.mxu0 0.0
        %916 = vmatpush.msra.mxu0 0.0
        %917 = vmatpush.msra.mxu0 0.0
        %918 = vmatpush.msra.mxu0 0.0
        %919 = vmatpush.msra.mxu0 %v900
        %920 = vmatpush.msra.mxu0 %v899
        %921 = vmatpush.msra.mxu0 %v898
        %922 = vmatpush.msra.mxu0 %v897
        %923 = vmatmul.f32.gmra.mxu0 %v902
        %v924 = vpop.f32.mrf.mxu0
        %v925 = vadd.f32 0.0, %v924
        %926 = vmatmul.f32.gmra.mxu0 %v905
        %v927 = vpop.f32.mrf.mxu0
        %v928 = vadd.f32 0.0, %v927
        %929 = vdwg.mxu0
        %v930 = vmax.f32 %v925, -5.0
        %v931 = vmax.f32 %v928, -5.0
        %v932 = vmin.f32 %v930, 5.0
        %v933 = vmin.f32 %v931, 5.0
        %v934 = vmul.f32 %v932, 1.442695
        %v935 = vpow.pop %v934
        %v936 = vmul.f32 %v933, 1.442695
        %v937 = vpow.pop %v936
        %v938 = vmul.f32 %v852, %v935
        %v939 = vmul.f32 %v855, %v937
        %v940 = vld [vmem:[#allocation5] sm:$0xff]
        %v941 = vld [vmem:[#allocation5 + $0x8] sm:$0xff]
        %942 = vxpose.xlu0.b32.start [1/16] %v767, 128
        %943 = vxpose.xlu0.b32.cont [2/16] %v768, 128
        %944 = vxpose.xlu0.b32.cont [3/16] 0.0, 128
        %945 = vxpose.xlu0.b32.cont [4/16] 0.0, 128
        %946 = vxpose.xlu0.b32.cont [5/16] 0.0, 128
        %947 = vxpose.xlu0.b32.cont [6/16] 0.0, 128
        %948 = vxpose.xlu0.b32.cont [7/16] 0.0, 128
        %949 = vxpose.xlu0.b32.cont [8/16] 0.0, 128
        %950 = vxpose.xlu0.b32.cont [9/16] 0.0, 128
        %951 = vxpose.xlu0.b32.cont [10/16] 0.0, 128
        %952 = vxpose.xlu0.b32.cont [11/16] 0.0, 128
        %953 = vxpose.xlu0.b32.cont [12/16] 0.0, 128
        %954 = vxpose.xlu0.b32.cont [13/16] 0.0, 128
        %955 = vxpose.xlu0.b32.cont [14/16] 0.0, 128
        %956 = vxpose.xlu0.b32.cont [15/16] 0.0, 128
        %957 = vxpose.xlu0.b32.end [16/16] 0.0, 128
        %v958 = vpop.trf.xlu0
        %v959 = vpop.trf.xlu0
        %v960 = vpop.trf.xlu0
        %v961 = vpop.trf.xlu0
        %v962 = vpop.trf.xlu0
        %v963 = vpop.trf.xlu0
        %v964 = vpop.trf.xlu0
        %v965 = vpop.trf.xlu0
        %v966 = vpop.trf.xlu0
        %v967 = vpop.trf.xlu0
        %v968 = vpop.trf.xlu0
        %v969 = vpop.trf.xlu0
        %v970 = vpop.trf.xlu0
        %v971 = vpop.trf.xlu0
        %v972 = vpop.trf.xlu0
        %v973 = vpop.trf.xlu0
        %v975 = vsel %vm771, %v958, 0
        %v978 = vsel %vm771, %v959, 0
        %980 = vmatpush.msra.mxu0 0.0
        %981 = vmatpush.msra.mxu0 0.0
        %982 = vmatpush.msra.mxu0 0.0
        %983 = vmatpush.msra.mxu0 0.0
        %984 = vmatpush.msra.mxu0 0.0
        %985 = vmatpush.msra.mxu0 0.0
        %986 = vmatpush.msra.mxu0 0.0
        %987 = vmatpush.msra.mxu0 0.0
        %988 = vmatpush.msra.mxu0 0.0
        %989 = vmatpush.msra.mxu0 0.0
        %990 = vmatpush.msra.mxu0 0.0
        %991 = vmatpush.msra.mxu0 0.0
        %992 = vmatpush.msra.mxu0 0.0
        %993 = vmatpush.msra.mxu0 0.0
        %994 = vmatpush.msra.mxu0 %v939
        %995 = vmatpush.msra.mxu0 %v938
        %996 = vmatmul.f32.gmra.mxu0 %v975
        %v997 = vpop.f32.mrf.mxu0
        %v998 = vadd.f32 0.0, %v997
        %999 = vmatmul.f32.gmra.mxu0 %v978
        %v1000 = vpop.f32.mrf.mxu0
        %v1001 = vadd.f32 0.0, %v1000
        %1002 = vdwg.mxu0
        %v1003 = vadd.f32 %v940, %v998
        %v1004 = vadd.f32 %v941, %v1001
        %1005 = vst.msk [vmem:[#allocation5] sm:$0xff] %vm863, %v1003
        %1006 = vst.msk [vmem:[#allocation5 + $0x8] sm:$0xff] %vm863, %v1004
        %v1007 = vld [vmem:[#allocation6] sm:$0xff]
        %v1008 = vld [vmem:[#allocation6 + $0x8] sm:$0xff]
        %1009 = vmatpush.msra.mxu0 0.0
        %1010 = vmatpush.msra.mxu0 0.0
        %1011 = vmatpush.msra.mxu0 0.0
        %1012 = vmatpush.msra.mxu0 0.0
        %1013 = vmatpush.msra.mxu0 0.0
        %1014 = vmatpush.msra.mxu0 0.0
        %1015 = vmatpush.msra.mxu0 0.0
        %1016 = vmatpush.msra.mxu0 0.0
        %1017 = vmatpush.msra.mxu0 0.0
        %1018 = vmatpush.msra.mxu0 0.0
        %1019 = vmatpush.msra.mxu0 0.0
        %1020 = vmatpush.msra.mxu0 0.0
        %1021 = vmatpush.msra.mxu0 0.0
        %1022 = vmatpush.msra.mxu0 0.0
        %1023 = vmatpush.msra.mxu0 %v937
        %1024 = vmatpush.msra.mxu0 %v935
        %1025 = vmatmul.f32.gmra.mxu0 %v975
        %v1026 = vpop.f32.mrf.mxu0
        %v1027 = vadd.f32 0.0, %v1026
        %1028 = vmatmul.f32.gmra.mxu0 %v978
        %v1029 = vpop.f32.mrf.mxu0
        %v1030 = vadd.f32 0.0, %v1029
        %1031 = vdwg.mxu0
        %v1032 = vadd.f32 %v1007, %v1027
        %v1033 = vadd.f32 %v1008, %v1030
        %1034 = vst.msk [vmem:[#allocation6] sm:$0xff] %vm863, %v1032
        %1035 = vst.msk [vmem:[#allocation6 + $0x8] sm:$0xff] %vm863, %v1033
        %p1036 = scmp.eq.s32.totalorder %s31, 3
        // Predicated region
        $region101: #{tpu_custom_call.1} parent=95 // pred_check
          %p1037 = pneg %p1036
        $region102: #{tpu_custom_call.1} parent=95 // pred_check_branch
          %1039 = sbr.rel (%p1037) target = $region104
        $region103: #{tpu_custom_call.1} parent=95 // pred_region
          %v1040 = vld [vmem:[#allocation5] sm:$0xff]
          %v1041 = vld [vmem:[#allocation5 + $0x8] sm:$0xff]
          %v1042 = vld [vmem:[#allocation6] sm:$0xff]
          %v1043 = vld [vmem:[#allocation6 + $0x8] sm:$0xff]
          %v1044 = vadd.f32 %v1042, 1e-06
          %v1045 = vadd.f32 %v1043, 1e-06
          %v1046 = vrcp.pop %v1044
          %v1047 = vmul.f32 %v1044, %v1046
          %v1048 = vsub.f32 1.0, %v1047
          %v1049 = vmul.f32 %v1046, %v1048
          %v1050 = vadd.f32 %v1046, %v1049
          %vm1051 = vweird.f32 %v1044
          %vm1052 = vweird.f32 %v1046
          %vm1053 = vmor %vm1051, %vm1052
          %v1054 = vsel %vm1053, %v1046, %v1050
          %v1055 = vand.u32 2147483647, %v1044
          %vm1056 = vcmp.eq.f32.partialorder %v1055, 8.507059e+37
          %v1057 = vand.u32 %v1044, 2147483648
          %v1058 = vor.u32 1.1754944e-38, %v1057
          %v1059 = vsel %vm1056, %v1058, %v1054
          %v1060 = vrcp.pop %v1045
          %v1061 = vmul.f32 %v1045, %v1060
          %v1062 = vsub.f32 1.0, %v1061
          %v1063 = vmul.f32 %v1060, %v1062
          %v1064 = vadd.f32 %v1060, %v1063
          %vm1065 = vweird.f32 %v1045
          %vm1066 = vweird.f32 %v1060
          %vm1067 = vmor %vm1065, %vm1066
          %v1068 = vsel %vm1067, %v1060, %v1064
          %v1069 = vand.u32 2147483647, %v1045
          %vm1070 = vcmp.eq.f32.partialorder %v1069, 8.507059e+37
          %v1071 = vand.u32 %v1045, 2147483648
          %v1072 = vor.u32 1.1754944e-38, %v1071
          %v1073 = vsel %vm1070, %v1072, %v1068
          %v1074 = vmul.f32 %v1040, %v1059
          %v1075 = vmul.f32 %v1041, %v1073
          %v1076 = vld [vmem:[%s9] sm:$0xff]
          %v1077 = vld [vmem:[%s9 + $0x8] sm:$0xff]
          %v1078 = vld [vmem:[%s9 + $0x10] sm:$0xff]
          %v1079 = vld [vmem:[%s9 + $0x18] sm:$0xff]
          %v1080 = vld [vmem:[%s10] sm:$0x1]
          %v1082 = vperm.slane %v1080, 0
          %v1085 = vsel %vm863, %v1074, 0
          %v1088 = vsel %vm863, %v1075, 0
          %1090 = vmatpush.msra.mxu0 0.0
          %1091 = vmatpush.msra.mxu0 0.0
          %1092 = vmatpush.msra.mxu0 0.0
          %1093 = vmatpush.msra.mxu0 0.0
          %1094 = vmatpush.msra.mxu0 0.0
          %1095 = vmatpush.msra.mxu0 0.0
          %1096 = vmatpush.msra.mxu0 0.0
          %1097 = vmatpush.msra.mxu0 0.0
          %1098 = vmatpush.msra.mxu0 0.0
          %1099 = vmatpush.msra.mxu0 0.0
          %1100 = vmatpush.msra.mxu0 0.0
          %1101 = vmatpush.msra.mxu0 0.0
          %1102 = vmatpush.msra.mxu0 %v1079
          %1103 = vmatpush.msra.mxu0 %v1078
          %1104 = vmatpush.msra.mxu0 %v1077
          %1105 = vmatpush.msra.mxu0 %v1076
          %1106 = vmatmul.f32.gmra.mxu0 %v1085
          %v1107 = vpop.f32.mrf.mxu0
          %v1108 = vadd.f32 %v1082, %v1107
          %1109 = vmatmul.f32.gmra.mxu0 %v1088
          %v1110 = vpop.f32.mrf.mxu0
          %v1111 = vadd.f32 %v1082, %v1110
          %1112 = vdwg.mxu0
          %v1113 = vld [vmem:[%s2] sm:$0xff]
          %v1114 = vld [vmem:[%s2 + $0x8] sm:$0xff]
          %v1115 = vadd.f32 %v1113, %v1108
          %v1116 = vadd.f32 %v1114, %v1111
          %v1117 = vsel %vm863, %v1115, 0.0
          %v1118 = vsel %vm863, %v1116, 0.0
          %v1119 = vadd.f32 %v1117, %v1118
          %v1120 = vrot.slane %v1119, 4
          %v1121 = vadd.f32 %v1119, %v1120
          %v1122 = vrot.slane %v1121, 2
          %v1123 = vadd.f32 %v1121, %v1122
          %v1124 = vrot.slane %v1123, 1
          %v1125 = vadd.f32 %v1123, %v1124
          %v1126 = vrcp.pop 16.0
          %v1127 = vmul.f32 16.0, %v1126
          %v1128 = vsub.f32 1.0, %v1127
          %v1129 = vmul.f32 %v1126, %v1128
          %v1130 = vadd.f32 %v1126, %v1129
          %vm1131 = vweird.f32 %v1126
          %v1132 = vsel %vm1131, %v1126, %v1130
          %v1133 = vmul.f32 %v1125, %v1132
          %v1134 = vmul.f32 %v1115, %v1115
          %v1135 = vmul.f32 %v1116, %v1116
          %v1136 = vsel %vm863, %v1134, 0.0
          %v1137 = vsel %vm863, %v1135, 0.0
          %v1138 = vadd.f32 %v1136, %v1137
          %v1139 = vrot.slane %v1138, 4
          %v1140 = vadd.f32 %v1138, %v1139
          %v1141 = vrot.slane %v1140, 2
          %v1142 = vadd.f32 %v1140, %v1141
          %v1143 = vrot.slane %v1142, 1
          %v1144 = vadd.f32 %v1142, %v1143
          %v1145 = vmul.f32 %v1144, %v1132
          %v1146 = vmul.f32 %v1133, %v1133
          %v1147 = vsub.f32 %v1145, %v1146
          %v1148 = vmax.f32 %v1147, 0.0
          %v1149 = vsub.f32 %v1115, %v1133
          %v1150 = vsub.f32 %v1116, %v1133
          %v1151 = vadd.f32 %v1148, 1e-05
          %v1152 = vrsqrt.pop %v1151
          %v1153 = vmul.f32 %v1152, %v1151
          %v1154 = vmul.f32 %v1153, %v1152
          %v1155 = vmul.f32 0.5, %v1154
          %v1156 = vsub.f32 1.5, %v1155
          %v1157 = vmul.f32 %v1152, %v1156
          %vm1158 = vweird.f32 %v1151
          %vm1159 = vweird.f32 %v1152
          %vm1160 = vmor %vm1158, %vm1159
          %v1161 = vsel %vm1160, %v1152, %v1157
          %v1162 = vmul.f32 %v1149, %v1161
          %v1163 = vmul.f32 %v1150, %v1161
          %v1164 = vld [vmem:[%s11] sm:$0x1]
          %v1166 = vperm.slane %v1164, 0
          %v1168 = vmul.f32 %v1162, %v1166
          %v1169 = vmul.f32 %v1163, %v1166
          %v1170 = vld [vmem:[%s12] sm:$0x1]
          %v1172 = vperm.slane %v1170, 0
          %v1174 = vadd.f32 %v1168, %v1172
          %v1175 = vadd.f32 %v1169, %v1172
          %v1176 = vld [vmem:[%s13] sm:$0xff]
          %v1177 = vld [vmem:[%s13 + $0x8] sm:$0xff]
          %v1178 = vld [vmem:[%s13 + $0x10] sm:$0xff]
          %v1179 = vld [vmem:[%s13 + $0x18] sm:$0xff]
          %v1180 = vld [vmem:[%s14] sm:$0x1]
          %v1182 = vperm.slane %v1180, 0
          %v1185 = vsel %vm863, %v1174, 0
          %v1188 = vsel %vm863, %v1175, 0
          %1190 = vmatpush.msra.mxu0 0.0
          %1191 = vmatpush.msra.mxu0 0.0
          %1192 = vmatpush.msra.mxu0 0.0
          %1193 = vmatpush.msra.mxu0 0.0
          %1194 = vmatpush.msra.mxu0 0.0
          %1195 = vmatpush.msra.mxu0 0.0
          %1196 = vmatpush.msra.mxu0 0.0
          %1197 = vmatpush.msra.mxu0 0.0
          %1198 = vmatpush.msra.mxu0 0.0
          %1199 = vmatpush.msra.mxu0 0.0
          %1200 = vmatpush.msra.mxu0 0.0
          %1201 = vmatpush.msra.mxu0 0.0
          %1202 = vmatpush.msra.mxu0 %v1179
          %1203 = vmatpush.msra.mxu0 %v1178
          %1204 = vmatpush.msra.mxu0 %v1177
          %1205 = vmatpush.msra.mxu0 %v1176
          %1206 = vmatmul.f32.gmra.mxu0 %v1185
          %v1207 = vpop.f32.mrf.mxu0
          %v1208 = vadd.f32 %v1182, %v1207
          %1209 = vmatmul.f32.gmra.mxu0 %v1188
          %v1210 = vpop.f32.mrf.mxu0
          %v1211 = vadd.f32 %v1182, %v1210
          %1212 = vdwg.mxu0
          %v1213 = vmax.f32 %v1208, 0.0
          %v1214 = vmax.f32 %v1211, 0.0
          %v1215 = vld [vmem:[%s15] sm:$0xff]
          %v1216 = vld [vmem:[%s15 + $0x8] sm:$0xff]
          %v1217 = vld [vmem:[%s15 + $0x10] sm:$0xff]
          %v1218 = vld [vmem:[%s15 + $0x18] sm:$0xff]
          %v1219 = vld [vmem:[%s15 + $0x20] sm:$0xff]
          %v1220 = vld [vmem:[%s15 + $0x28] sm:$0xff]
          %v1221 = vld [vmem:[%s15 + $0x30] sm:$0xff]
          %v1222 = vld [vmem:[%s15 + $0x38] sm:$0xff]
          %v1223 = vld [vmem:[%s16] sm:$0x1]
          %v1225 = vperm.slane %v1223, 0
          %vm1227 = vcmask 523264
          %v1229 = vsel %vm1227, %v1213, 0
          %v1232 = vsel %vm1227, %v1214, 0
          %1234 = vmatpush.msra.mxu0 0.0
          %1235 = vmatpush.msra.mxu0 0.0
          %1236 = vmatpush.msra.mxu0 0.0
          %1237 = vmatpush.msra.mxu0 0.0
          %1238 = vmatpush.msra.mxu0 0.0
          %1239 = vmatpush.msra.mxu0 0.0
          %1240 = vmatpush.msra.mxu0 0.0
          %1241 = vmatpush.msra.mxu0 0.0
          %1242 = vmatpush.msra.mxu0 %v1222
          %1243 = vmatpush.msra.mxu0 %v1221
          %1244 = vmatpush.msra.mxu0 %v1220
          %1245 = vmatpush.msra.mxu0 %v1219
          %1246 = vmatpush.msra.mxu0 %v1218
          %1247 = vmatpush.msra.mxu0 %v1217
          %1248 = vmatpush.msra.mxu0 %v1216
          %1249 = vmatpush.msra.mxu0 %v1215
          %1250 = vmatmul.f32.gmra.mxu0 %v1229
          %v1251 = vpop.f32.mrf.mxu0
          %v1252 = vadd.f32 %v1225, %v1251
          %1253 = vmatmul.f32.gmra.mxu0 %v1232
          %v1254 = vpop.f32.mrf.mxu0
          %v1255 = vadd.f32 %v1225, %v1254
          %1256 = vdwg.mxu0
          %v1257 = vadd.f32 %v1174, %v1252
          %v1258 = vadd.f32 %v1175, %v1255
          %v1259 = vsel %vm863, %v1257, 0.0
          %v1260 = vsel %vm863, %v1258, 0.0
          %v1261 = vadd.f32 %v1259, %v1260
          %v1262 = vrot.slane %v1261, 4
          %v1263 = vadd.f32 %v1261, %v1262
          %v1264 = vrot.slane %v1263, 2
          %v1265 = vadd.f32 %v1263, %v1264
          %v1266 = vrot.slane %v1265, 1
          %v1267 = vadd.f32 %v1265, %v1266
          %v1268 = vmul.f32 %v1267, %v1132
          %v1269 = vmul.f32 %v1257, %v1257
          %v1270 = vmul.f32 %v1258, %v1258
          %v1271 = vsel %vm863, %v1269, 0.0
          %v1272 = vsel %vm863, %v1270, 0.0
          %v1273 = vadd.f32 %v1271, %v1272
          %v1274 = vrot.slane %v1273, 4
          %v1275 = vadd.f32 %v1273, %v1274
          %v1276 = vrot.slane %v1275, 2
          %v1277 = vadd.f32 %v1275, %v1276
          %v1278 = vrot.slane %v1277, 1
          %v1279 = vadd.f32 %v1277, %v1278
          %v1280 = vmul.f32 %v1279, %v1132
          %v1281 = vmul.f32 %v1268, %v1268
          %v1282 = vsub.f32 %v1280, %v1281
          %v1283 = vmax.f32 %v1282, 0.0
          %v1284 = vsub.f32 %v1257, %v1268
          %v1285 = vsub.f32 %v1258, %v1268
          %v1286 = vadd.f32 %v1283, 1e-05
          %v1287 = vrsqrt.pop %v1286
          %v1288 = vmul.f32 %v1287, %v1286
          %v1289 = vmul.f32 %v1288, %v1287
          %v1290 = vmul.f32 0.5, %v1289
          %v1291 = vsub.f32 1.5, %v1290
          %v1292 = vmul.f32 %v1287, %v1291
          %vm1293 = vweird.f32 %v1286
          %vm1294 = vweird.f32 %v1287
          %vm1295 = vmor %vm1293, %vm1294
          %v1296 = vsel %vm1295, %v1287, %v1292
          %v1297 = vmul.f32 %v1284, %v1296
          %v1298 = vmul.f32 %v1285, %v1296
          %v1299 = vld [vmem:[%s17] sm:$0x1]
          %v1301 = vperm.slane %v1299, 0
          %v1303 = vmul.f32 %v1297, %v1301
          %v1304 = vmul.f32 %v1298, %v1301
          %v1305 = vld [vmem:[%s18] sm:$0x1]
          %v1307 = vperm.slane %v1305, 0
          %v1309 = vadd.f32 %v1303, %v1307
          %v1310 = vadd.f32 %v1304, %v1307
          %1311 = vst.msk [vmem:[#allocation7] sm:$0xff] %vm863, %v1309
          %1312 = vst.msk [vmem:[#allocation7 + $0x8] sm:$0xff] %vm863, %v1310
        $region104: #{tpu_custom_call.1} parent=95 // pred_fallthru
          _
        // Predicated region
        $region105: #{tpu_custom_call.1} parent=95 // pred_check
          %p1313 = pneg %p458
        $region106: #{tpu_custom_call.1} parent=95 // pred_check_branch
          %1315 = sbr.rel (%p1313) target = $region108
        $region107: #{tpu_custom_call.1} parent=95 // pred_region
          %1317 = vsyncadd [#allocation8], 0
          %s1318 = sshll.u32 [#allocation7], 4
          %s1319 = int_to_ptr.vmem [resolvable:$true] %s1318
          %s1320 = sshll.u32 %s19, 4
          %s1321 = int_to_ptr.hbm [resolvable:$true] %s1320
          %1326 = dma.vmem_to_hbm [thread:$0]  %s1319, 256, %s1321, [#allocation8], 128, 128, 8
        $region108: #{tpu_custom_call.1} parent=95 // pred_fallthru
          _
        // Predicated region
        $region109: #{tpu_custom_call.1} parent=95 // pred_check
          %p1327 = pneg %p458
        $region110: #{tpu_custom_call.1} parent=95 // pred_check_branch
          %1329 = sbr.rel (%p1327) target = $region112
        $region111: #{tpu_custom_call.1} parent=95 // pred_region
          %1331 = dma.done [#allocation8], 256
        $region112: #{tpu_custom_call.1} parent=95 // pred_fallthru
          _
      $region96: #{tpu_custom_call.1} parent=5 // pred_fallthru
        _
      %p1332 = scmp.le.s32.totalorder 2, %s26
      // Predicated region
      $region113: #{tpu_custom_call.1} parent=5 // pred_check
        %p1333 = pneg %p1332
      $region114: #{tpu_custom_call.1} parent=5 // pred_check_branch
        %1335 = sbr.rel (%p1333) target = $region116
      $region115: #{tpu_custom_call.1} parent=5 // pred_region
        %s1336 = ssub.s32 %s26, 2
      $region116: #{tpu_custom_call.1} parent=5 // pred_fallthru
        _
    $region6: #{tpu_custom_call.1} parent=1 // loop_footer
      %s30 = sadd.s32 1, %s26
    $region7: #{tpu_custom_call.1} parent=1 // loop_footer_branch
      %25 = sbr.rel target = $region3
    $region8: #{tpu_custom_call.1} parent=1 // loop_exit
      _
    %1337 = vsyncpa [#allocation8], 1
    %s1338 = scalar_lea.sflag [#allocation8], 1
    %1339 = vsyncpa %s1338, 1

</llo_original>
